<compile_context>
chip_gen: v7x
topology: tpu7x:2x2x1
jax: 0.10.0
libtpu: 0.0.40
codegen_flags: <defaults>
</compile_context>

<pallas_src>
import jax
import jax.numpy as jnp
from jax.experimental import pallas as pl
from jax.experimental.pallas import tpu as pltpu

IN_DIM = 4
H1, H2, OUT = 256, 512, 784
BN_EPS = 1e-5
LEAKY_SLOPE = 0.2


def _leaky_relu(x):
    # For slope in (0,1): max(x, slope*x) == where(x>=0, x, slope*x).
    return jnp.maximum(x, LEAKY_SLOPE * x)


def _batchnorm_train(h):
    # BatchNorm1d(affine=False), training mode: batch mean, biased variance.
    # Centered tensor is reused so the mean broadcast is emitted exactly once;
    # inv_std broadcast is emitted exactly once. rsqrt runs on the EUP slot.
    mean = jnp.mean(h, axis=0, keepdims=True)
    centered = h - mean
    var = jnp.mean(centered * centered, axis=0, keepdims=True)
    inv_std = jax.lax.rsqrt(var + BN_EPS)
    return centered * inv_std


def temp_generator_kernel(x_ref, w1_ref, w2_ref, w3_ref, out_ref):
    x = x_ref[...].astype(jnp.float32)        # (B, 4)   f32
    w1 = w1_ref[...]                          # (4, 256) f32 (tiny, stays f32)

    # ---- layer1: K=4 contraction kept OFF the MXU: 4 unrolled VPU FMAs ----
    h1 = x[:, 0:1] * w1[0:1, :]
    for k in range(1, IN_DIM):                # static unroll, traces to 3 more FMAs
        h1 = h1 + x[:, k:k + 1] * w1[k:k + 1, :]
    h1 = _leaky_relu(_batchnorm_train(h1))    # (B, 256) f32

    # ---- layer2: bf16 MXU matmul, f32 accumulate; BN/act in f32 ----
    h2 = jnp.dot(h1.astype(jnp.bfloat16), w2_ref[...],
                 preferred_element_type=jnp.float32)
    h2 = _leaky_relu(_batchnorm_train(h2))    # (B, 512) f32

    # ---- layer3: bf16 MXU matmul, stored directly into the (B, 784) output ----
    h3 = jnp.dot(h2.astype(jnp.bfloat16), w3_ref[...],
                 preferred_element_type=jnp.float32)
    out_ref[...] = h3.astype(out_ref.dtype)


def prepare_params(w1, w2, w3):
    """One-time weight prep: w1 stays f32; w2/w3 -> bf16 (no zero padding)."""
    w1p = w1.astype(jnp.float32)      # (4, 256)
    w2p = w2.astype(jnp.bfloat16)     # (256, 512)
    w3p = w3.astype(jnp.bfloat16)     # (512, 784)
    return w1p, w2p, w3p


def temp_generator_forward(x, w1p, w2p, w3p):
    """x: (B, in_dim) f32 (or anything flattenable to it) -> (B, 28, 28) f32.

    Note: B must be >= 2 for meaningful training-mode BatchNorm statistics
    (PyTorch raises for B=1 in training mode; here B=1 gives var=0 -> 1/sqrt(eps)).
    """
    x = x.reshape(x.shape[0], -1)   # mirrors x.flatten(1)
    B = x.shape[0]

    full = lambda shape: pl.BlockSpec(shape, lambda: (0,) * len(shape))

    cost = pl.CostEstimate(
        flops=2 * B * (IN_DIM * H1 + H1 * H2 + H2 * OUT),
        transcendentals=H1 + H2,  # per-feature rsqrt in the two BN layers
        bytes_accessed=(B * IN_DIM * 4 + IN_DIM * H1 * 4
                        + H1 * H2 * 2 + H2 * OUT * 2
                        + B * OUT * 4),
    )

    # Single-block kernel: full-batch BatchNorm stats require the whole batch to
    # be resident, and at this footprint (~1.15 MiB bf16 weights + ~10 KiB/row of
    # f32/bf16 activations) it fits comfortably at small/medium B. The explicit
    # 48 MiB VMEM limit stays inside v7x's 64 MiB physical VMEM.
    out_flat = pl.pallas_call(
        temp_generator_kernel,
        out_shape=jax.ShapeDtypeStruct((B, OUT), jnp.float32),
        grid_spec=pltpu.PrefetchScalarGridSpec(
            num_scalar_prefetch=0,
            grid=(),
            in_specs=[
                full(x.shape),
                full(w1p.shape),
                full(w2p.shape),
                full(w3p.shape),
            ],
            out_specs=full((B, OUT)),
        ),
        compiler_params=pltpu.CompilerParams(vmem_limit_bytes=48 << 20),
        cost_estimate=cost,
    )(x, w1p, w2p, w3p)

    return out_flat.reshape(B, 28, 28)


def make_params(key):
    # Deterministic synthetic weights (PyTorch-like uniform fan-in init),
    # stored as (in, out) so the kernel computes x @ W.
    k1, k2, k3 = jax.random.split(key, 3)

    def uni(k, shape, fan_in):
        bound = 1.0 / jnp.sqrt(fan_in)
        return jax.random.uniform(k, shape, jnp.float32, -bound, bound)

    w1 = uni(k1, (IN_DIM, H1), IN_DIM)
    w2 = uni(k2, (H1, H2), H1)
    w3 = uni(k3, (H2, OUT), H2)
    return w1, w2, w3


def reference_forward(x, w1, w2, w3, w2_dtype=jnp.bfloat16, w3_dtype=jnp.bfloat16):
    """Pure-JAX reference; w2_dtype/w3_dtype select kernel-matched or f32 weights."""
    x = x.reshape(x.shape[0], -1).astype(jnp.float32)
    h1 = jnp.dot(x, w1.astype(jnp.float32), precision=jax.lax.Precision.HIGHEST)
    h1 = _leaky_relu(_batchnorm_train(h1))
    h2 = jnp.dot(h1.astype(w2_dtype), w2.astype(w2_dtype),
                 preferred_element_type=jnp.float32)
    h2 = _leaky_relu(_batchnorm_train(h2))
    h3 = jnp.dot(h2.astype(w3_dtype), w3.astype(w3_dtype),
                 preferred_element_type=jnp.float32)
    return h3.reshape(x.shape[0], 28, 28)


if __name__ == "__main__":
    key = jax.random.PRNGKey(0)
    kx, kp = jax.random.split(key)

    B = 8
    x = jax.random.normal(kx, (B, IN_DIM), jnp.float32)
    w1, w2, w3 = make_params(kp)
    w1p, w2p, w3p = prepare_params(w1, w2, w3)

    out = temp_generator_forward(x, w1p, w2p, w3p)
    out = jax.block_until_ready(out)
    assert out.shape == (B, 28, 28)

    # Check against a reference that uses the same bf16 weights (tight tolerance).
    ref_bf16 = reference_forward(x, w1, w2, w3)
    assert bool(jnp.allclose(out, ref_bf16, atol=1e-2, rtol=1e-2))

    # Check against the full-f32-weight reference (bf16 weight quantization error).
    ref_f32 = reference_forward(x, w1, w2, w3,
                                w2_dtype=jnp.float32, w3_dtype=jnp.float32)
    assert bool(jnp.allclose(out, ref_f32, atol=1e-1, rtol=1e-1))

    print("KERNEL_OK")
</pallas_src>

<mosaic_0001>
module attributes {stable_mosaic.version = 11 : i64} {
  func.func @temp_generator_kernel(%arg0: memref<8x4xf32, #tpu.memory_space<vmem>>, %arg1: memref<4x256xf32, #tpu.memory_space<vmem>>, %arg2: memref<256x512xbf16, #tpu.memory_space<vmem>>, %arg3: memref<512x784xbf16, #tpu.memory_space<vmem>>, %arg4: memref<8x784xf32, #tpu.memory_space<vmem>>) attributes {dimension_semantics = [], scalar_prefetch = 0 : i64, scratch_operands = 0 : i64, tpu.core_type = #tpu.core_type<tc>} {
    %c0 = arith.constant 0 : index
    %c0_0 = arith.constant 0 : index
    %0 = vector.load %arg0[%c0, %c0_0] : memref<8x4xf32, #tpu.memory_space<vmem>>, vector<8x4xf32>
    %c0_1 = arith.constant 0 : index
    %c0_2 = arith.constant 0 : index
    %1 = vector.load %arg1[%c0_1, %c0_2] : memref<4x256xf32, #tpu.memory_space<vmem>>, vector<4x256xf32>
    %2 = vector.extract_strided_slice %0 {offsets = [0, 0], sizes = [8, 1], strides = [1, 1]} : vector<8x4xf32> to vector<8x1xf32>
    %3 = vector.extract_strided_slice %1 {offsets = [0, 0], sizes = [1, 256], strides = [1, 1]} : vector<4x256xf32> to vector<1x256xf32>
    %4 = vector.broadcast %2 : vector<8x1xf32> to vector<8x256xf32>
    %5 = vector.broadcast %3 : vector<1x256xf32> to vector<8x256xf32>
    %6 = arith.mulf %4, %5 : vector<8x256xf32>
    %7 = vector.extract_strided_slice %0 {offsets = [0, 1], sizes = [8, 1], strides = [1, 1]} : vector<8x4xf32> to vector<8x1xf32>
    %8 = vector.extract_strided_slice %1 {offsets = [1, 0], sizes = [1, 256], strides = [1, 1]} : vector<4x256xf32> to vector<1x256xf32>
    %9 = vector.broadcast %7 : vector<8x1xf32> to vector<8x256xf32>
    %10 = vector.broadcast %8 : vector<1x256xf32> to vector<8x256xf32>
    %11 = arith.mulf %9, %10 : vector<8x256xf32>
    %12 = arith.addf %6, %11 : vector<8x256xf32>
    %13 = vector.extract_strided_slice %0 {offsets = [0, 2], sizes = [8, 1], strides = [1, 1]} : vector<8x4xf32> to vector<8x1xf32>
    %14 = vector.extract_strided_slice %1 {offsets = [2, 0], sizes = [1, 256], strides = [1, 1]} : vector<4x256xf32> to vector<1x256xf32>
    %15 = vector.broadcast %13 : vector<8x1xf32> to vector<8x256xf32>
    %16 = vector.broadcast %14 : vector<1x256xf32> to vector<8x256xf32>
    %17 = arith.mulf %15, %16 : vector<8x256xf32>
    %18 = arith.addf %12, %17 : vector<8x256xf32>
    %19 = vector.extract_strided_slice %0 {offsets = [0, 3], sizes = [8, 1], strides = [1, 1]} : vector<8x4xf32> to vector<8x1xf32>
    %20 = vector.extract_strided_slice %1 {offsets = [3, 0], sizes = [1, 256], strides = [1, 1]} : vector<4x256xf32> to vector<1x256xf32>
    %21 = vector.broadcast %19 : vector<8x1xf32> to vector<8x256xf32>
    %22 = vector.broadcast %20 : vector<1x256xf32> to vector<8x256xf32>
    %23 = arith.mulf %21, %22 : vector<8x256xf32>
    %24 = arith.addf %18, %23 : vector<8x256xf32>
    %cst = arith.constant dense<0.000000e+00> : vector<256xf32>
    %25 = vector.multi_reduction <add>, %24, %cst [0] : vector<8x256xf32> to vector<256xf32>
    %26 = vector.shape_cast %25 : vector<256xf32> to vector<1x256xf32>
    %cst_3 = arith.constant 8.000000e+00 : f32
    %27 = vector.broadcast %cst_3 : f32 to vector<1x256xf32>
    %28 = arith.divf %26, %27 : vector<1x256xf32>
    %29 = vector.broadcast %28 : vector<1x256xf32> to vector<8x256xf32>
    %30 = arith.subf %24, %29 : vector<8x256xf32>
    %31 = arith.mulf %30, %30 : vector<8x256xf32>
    %cst_4 = arith.constant dense<0.000000e+00> : vector<256xf32>
    %32 = vector.multi_reduction <add>, %31, %cst_4 [0] : vector<8x256xf32> to vector<256xf32>
    %33 = vector.shape_cast %32 : vector<256xf32> to vector<1x256xf32>
    %cst_5 = arith.constant 8.000000e+00 : f32
    %34 = vector.broadcast %cst_5 : f32 to vector<1x256xf32>
    %35 = arith.divf %33, %34 : vector<1x256xf32>
    %cst_6 = arith.constant 9.99999974E-6 : f32
    %36 = vector.broadcast %cst_6 : f32 to vector<1x256xf32>
    %37 = arith.addf %35, %36 : vector<1x256xf32>
    %38 = math.rsqrt %37 : vector<1x256xf32>
    %39 = vector.broadcast %38 : vector<1x256xf32> to vector<8x256xf32>
    %40 = arith.mulf %30, %39 : vector<8x256xf32>
    %cst_7 = arith.constant 2.000000e-01 : f32
    %41 = vector.broadcast %cst_7 : f32 to vector<8x256xf32>
    %42 = arith.mulf %41, %40 : vector<8x256xf32>
    %43 = arith.maximumf %40, %42 : vector<8x256xf32>
    %44 = arith.truncf %43 : vector<8x256xf32> to vector<8x256xbf16>
    %c0_8 = arith.constant 0 : index
    %c0_9 = arith.constant 0 : index
    %45 = vector.load %arg2[%c0_8, %c0_9] : memref<256x512xbf16, #tpu.memory_space<vmem>>, vector<256x512xbf16>
    %cst_10 = arith.constant dense<0.000000e+00> : vector<8x512xf32>
    %46 = tpu.matmul %44, %45, %cst_10 {dimension_numbers = #tpu.dot_dimension_numbers<[1], [0], [0], [1], [0, 0, 1, 1], [], []>} : vector<8x256xbf16>, vector<256x512xbf16>, vector<8x512xf32> -> vector<8x512xf32>
    %cst_11 = arith.constant dense<0.000000e+00> : vector<512xf32>
    %47 = vector.multi_reduction <add>, %46, %cst_11 [0] : vector<8x512xf32> to vector<512xf32>
    %48 = vector.shape_cast %47 : vector<512xf32> to vector<1x512xf32>
    %cst_12 = arith.constant 8.000000e+00 : f32
    %49 = vector.broadcast %cst_12 : f32 to vector<1x512xf32>
    %50 = arith.divf %48, %49 : vector<1x512xf32>
    %51 = vector.broadcast %50 : vector<1x512xf32> to vector<8x512xf32>
    %52 = arith.subf %46, %51 : vector<8x512xf32>
    %53 = arith.mulf %52, %52 : vector<8x512xf32>
    %cst_13 = arith.constant dense<0.000000e+00> : vector<512xf32>
    %54 = vector.multi_reduction <add>, %53, %cst_13 [0] : vector<8x512xf32> to vector<512xf32>
    %55 = vector.shape_cast %54 : vector<512xf32> to vector<1x512xf32>
    %cst_14 = arith.constant 8.000000e+00 : f32
    %56 = vector.broadcast %cst_14 : f32 to vector<1x512xf32>
    %57 = arith.divf %55, %56 : vector<1x512xf32>
    %cst_15 = arith.constant 9.99999974E-6 : f32
    %58 = vector.broadcast %cst_15 : f32 to vector<1x512xf32>
    %59 = arith.addf %57, %58 : vector<1x512xf32>
    %60 = math.rsqrt %59 : vector<1x512xf32>
    %61 = vector.broadcast %60 : vector<1x512xf32> to vector<8x512xf32>
    %62 = arith.mulf %52, %61 : vector<8x512xf32>
    %cst_16 = arith.constant 2.000000e-01 : f32
    %63 = vector.broadcast %cst_16 : f32 to vector<8x512xf32>
    %64 = arith.mulf %63, %62 : vector<8x512xf32>
    %65 = arith.maximumf %62, %64 : vector<8x512xf32>
    %66 = arith.truncf %65 : vector<8x512xf32> to vector<8x512xbf16>
    %c0_17 = arith.constant 0 : index
    %c0_18 = arith.constant 0 : index
    %67 = vector.load %arg3[%c0_17, %c0_18] : memref<512x784xbf16, #tpu.memory_space<vmem>>, vector<512x784xbf16>
    %cst_19 = arith.constant dense<0.000000e+00> : vector<8x784xf32>
    %68 = tpu.matmul %66, %67, %cst_19 {dimension_numbers = #tpu.dot_dimension_numbers<[1], [0], [0], [1], [0, 0, 1, 1], [], []>} : vector<8x512xbf16>, vector<512x784xbf16>, vector<8x784xf32> -> vector<8x784xf32>
    %c0_20 = arith.constant 0 : index
    %c0_21 = arith.constant 0 : index
    %69 = vector.load %arg4[%c0_20, %c0_21] : memref<8x784xf32, #tpu.memory_space<vmem>>, vector<8x784xf32>
    tpu.vector_store %arg4[%c0_20, %c0_21], %68 {strides = array<i32>} : memref<8x784xf32, #tpu.memory_space<vmem>>, vector<8x784xf32>,
    return
  }
}

</mosaic_0001>

<llo_original>
// kernel: tpu_custom_call.1
$region0: #{tpu_custom_call.1}
  #allocation0 [shape = 'u32[]', space=smem, size = 0x4, offset = 0x4, fixed_abs, tag = 'smem constant byte address 0x4 - core index']
  #allocation1 [shape = 'u32[144,128]{1,0:T(1,128)}', space=vmem, size = 0x12000, scoped, tag = 'internal scratch']
  %s0 = inlined_call_operand.vmem [shape: f32[8,4], index: 0, kind: input, shape index: {}]
  %s1 = inlined_call_operand.vmem [shape: f32[4,256], index: 1, kind: input, shape index: {}]
  %s2 = inlined_call_operand.vmem [shape: bf16[256,512], index: 2, kind: input, shape index: {}]
  %s3 = inlined_call_operand.vmem [shape: bf16[512,784], index: 3, kind: input, shape index: {}]
  %s4 = inlined_call_operand.hbm [shape: f32[8,784], index: 4, kind: output, shape index: {}]
  %s5 = sld [smem:[#allocation0]]
  $region26: #{tpu_custom_call.1} parent=0
    _
  %s7 = ssub.s32 1, %s5
  %s8 = scalar_select 0, %s7, %s5
  $region1: #{tpu_custom_call.1} parent=0
    #allocation2 [shape = 'u8[28672]{0}', space=vmem, size = 0x7000, scoped, tag = 'output window, operand 0, single buffered']
    #allocation3 [shape = 's32[1]{0}', space=sflag, size = 0x4, scoped, tag = 'scoped memory for tpu_custom_call.1']
    %9 = vsyncpa [#allocation3], 0
    // Predicated region
    $region2: #{tpu_custom_call.1} parent=1 // pred_check
      _
    $region3: #{tpu_custom_call.1} parent=1 // pred_check_branch
      %11 = sbr.rel (0) target = $region5
    $region4: #{tpu_custom_call.1} parent=1 // pred_region
      _
    $region5: #{tpu_custom_call.1} parent=1 // pred_fallthru
      _
    // Predicated region
    $region6: #{tpu_custom_call.1} parent=1 // pred_check
      _
    $region7: #{tpu_custom_call.1} parent=1 // pred_check_branch
      %13 = sbr.rel (0) target = $region9
    $region8: #{tpu_custom_call.1} parent=1 // pred_region
      _
    $region9: #{tpu_custom_call.1} parent=1 // pred_fallthru
      _
    // Predicated region
    $region10: #{tpu_custom_call.1} parent=1 // pred_check
      _
    $region11: #{tpu_custom_call.1} parent=1 // pred_check_branch
      %15 = sbr.rel (0) target = $region13
    $region12: #{tpu_custom_call.1} parent=1 // pred_region
      _
    $region13: #{tpu_custom_call.1} parent=1 // pred_fallthru
      _
    // Predicated region
    $region14: #{tpu_custom_call.1} parent=1 // pred_check
      _
    $region15: #{tpu_custom_call.1} parent=1 // pred_check_branch
      %17 = sbr.rel (0) target = $region17
    $region16: #{tpu_custom_call.1} parent=1 // pred_region
      _
    $region17: #{tpu_custom_call.1} parent=1 // pred_fallthru
      _
    %v19 = vld [vmem:[%s0] sm:$0xff]
    %v20 = vld [vmem:[%s1] sm:$0xff]
    %22 = vset.pattern.permute.xlu0 0
    %23 = vperm.xlu0 %22, %v19
    %v24 = vpop.permute.xlu0 %23
    %v27 = vlaneseq
    %v28 = vshrl.u32 %v27, 7
    %v29 = vsub.s32 0, %v28
    %v30 = vrot.slane %v20, %v29
    %v31 = vlaneseq
    %v32 = vshrl.u32 %v31, 7
    %v33 = vsub.s32 4, %v32
    %v34 = vrot.slane %v20, %v33
    %v37 = vlaneseq
    %v38 = vshrl.u32 %v37, 7
    %v39 = vsub.s32 0, %v38
    %v40 = vrot.slane %v30, %v39
    %v41 = vlaneseq
    %v42 = vshrl.u32 %v41, 7
    %v43 = vsub.s32 0, %v42
    %v44 = vrot.slane %v34, %v43
    %v45 = vmul.f32 %v24, %v40
    %v46 = vmul.f32 %v24, %v44
    %47 = vset.pattern.permute.xlu0 1
    %48 = vperm.xlu0 %47, %v19
    %v49 = vpop.permute.xlu0 %48
    %v51 = vlaneseq
    %v52 = vshrl.u32 %v51, 7
    %v53 = vsub.s32 1, %v52
    %v54 = vrot.slane %v20, %v53
    %v55 = vlaneseq
    %v56 = vshrl.u32 %v55, 7
    %v57 = vsub.s32 5, %v56
    %v58 = vrot.slane %v20, %v57
    %v61 = vlaneseq
    %v62 = vshrl.u32 %v61, 7
    %v63 = vsub.s32 1, %v62
    %v64 = vrot.slane %v54, %v63
    %v65 = vlaneseq
    %v66 = vshrl.u32 %v65, 7
    %v67 = vsub.s32 1, %v66
    %v68 = vrot.slane %v58, %v67
    %v69 = vmul.f32 %v49, %v64
    %v70 = vmul.f32 %v49, %v68
    %v71 = vadd.f32 %v45, %v69
    %v72 = vadd.f32 %v46, %v70
    %73 = vset.pattern.permute.xlu0 2
    %74 = vperm.xlu0 %73, %v19
    %v75 = vpop.permute.xlu0 %74
    %v77 = vlaneseq
    %v78 = vshrl.u32 %v77, 7
    %v79 = vsub.s32 2, %v78
    %v80 = vrot.slane %v20, %v79
    %v81 = vlaneseq
    %v82 = vshrl.u32 %v81, 7
    %v83 = vsub.s32 6, %v82
    %v84 = vrot.slane %v20, %v83
    %v87 = vlaneseq
    %v88 = vshrl.u32 %v87, 7
    %v89 = vsub.s32 2, %v88
    %v90 = vrot.slane %v80, %v89
    %v91 = vlaneseq
    %v92 = vshrl.u32 %v91, 7
    %v93 = vsub.s32 2, %v92
    %v94 = vrot.slane %v84, %v93
    %v95 = vmul.f32 %v75, %v90
    %v96 = vmul.f32 %v75, %v94
    %v97 = vadd.f32 %v71, %v95
    %v98 = vadd.f32 %v72, %v96
    %99 = vset.pattern.permute.xlu0 3
    %100 = vperm.xlu0 %99, %v19
    %v101 = vpop.permute.xlu0 %100
    %v103 = vlaneseq
    %v104 = vshrl.u32 %v103, 7
    %v105 = vsub.s32 3, %v104
    %v106 = vrot.slane %v20, %v105
    %v107 = vlaneseq
    %v108 = vshrl.u32 %v107, 7
    %v109 = vsub.s32 7, %v108
    %v110 = vrot.slane %v20, %v109
    %v113 = vlaneseq
    %v114 = vshrl.u32 %v113, 7
    %v115 = vsub.s32 3, %v114
    %v116 = vrot.slane %v106, %v115
    %v117 = vlaneseq
    %v118 = vshrl.u32 %v117, 7
    %v119 = vsub.s32 3, %v118
    %v120 = vrot.slane %v110, %v119
    %v121 = vmul.f32 %v101, %v116
    %v122 = vmul.f32 %v101, %v120
    %v123 = vadd.f32 %v97, %v121
    %v124 = vadd.f32 %v98, %v122
    %v125 = vrot.slane %v123, 4
    %v126 = vadd.f32 %v123, %v125
    %v127 = vrot.slane %v126, 2
    %v128 = vadd.f32 %v126, %v127
    %v129 = vrot.slane %v128, 1
    %v130 = vadd.f32 %v128, %v129
    %v131 = vrot.slane %v124, 4
    %v132 = vadd.f32 %v124, %v131
    %v133 = vrot.slane %v132, 2
    %v134 = vadd.f32 %v132, %v133
    %v135 = vrot.slane %v134, 1
    %v136 = vadd.f32 %v134, %v135
    %v137 = vrcp.pop 8.0
    %v138 = vmul.f32 %v130, %v137
    %v139 = vmul.f32 %v136, %v137
    %v140 = vsub.f32 %v123, %v138
    %v141 = vsub.f32 %v124, %v139
    %v142 = vmul.f32 %v140, %v140
    %v143 = vmul.f32 %v141, %v141
    %v144 = vrot.slane %v142, 4
    %v145 = vadd.f32 %v142, %v144
    %v146 = vrot.slane %v145, 2
    %v147 = vadd.f32 %v145, %v146
    %v148 = vrot.slane %v147, 1
    %v149 = vadd.f32 %v147, %v148
    %v150 = vrot.slane %v143, 4
    %v151 = vadd.f32 %v143, %v150
    %v152 = vrot.slane %v151, 2
    %v153 = vadd.f32 %v151, %v152
    %v154 = vrot.slane %v153, 1
    %v155 = vadd.f32 %v153, %v154
    %v156 = vmul.f32 %v149, %v137
    %v157 = vmul.f32 %v155, %v137
    %v158 = vadd.f32 %v156, 1e-05
    %v159 = vadd.f32 %v157, 1e-05
    %v160 = vrsqrt.pop %v158
    %v161 = vrsqrt.pop %v159
    %v162 = vmul.f32 %v140, %v160
    %v163 = vmul.f32 %v141, %v161
    %v164 = vmul.f32 %v162, 0.2
    %v165 = vmul.f32 %v163, 0.2
    %v166 = vmax.f32 %v162, %v164
    %v167 = vmax.f32 %v163, %v165
    %v168 = vpack.c.bf16 %v166, %v166
    %v169 = vpack.c.bf16 %v167, %v167
    %v170 = vld [vmem:[%s2] sm:$0xff]
    %v171 = vld [vmem:[%s2 + $0x8] sm:$0xff]
    %v172 = vld [vmem:[%s2 + $0x10] sm:$0xff]
    %v173 = vld [vmem:[%s2 + $0x18] sm:$0xff]
    %v174 = vld [vmem:[%s2 + $0x20] sm:$0xff]
    %v175 = vld [vmem:[%s2 + $0x28] sm:$0xff]
    %v176 = vld [vmem:[%s2 + $0x30] sm:$0xff]
    %v177 = vld [vmem:[%s2 + $0x38] sm:$0xff]
    %v178 = vld [vmem:[%s2 + $0x40] sm:$0xff]
    %v179 = vld [vmem:[%s2 + $0x48] sm:$0xff]
    %v180 = vld [vmem:[%s2 + $0x50] sm:$0xff]
    %v181 = vld [vmem:[%s2 + $0x58] sm:$0xff]
    %v182 = vld [vmem:[%s2 + $0x60] sm:$0xff]
    %v183 = vld [vmem:[%s2 + $0x68] sm:$0xff]
    %v184 = vld [vmem:[%s2 + $0x70] sm:$0xff]
    %v185 = vld [vmem:[%s2 + $0x78] sm:$0xff]
    %v186 = vld [vmem:[%s2 + $0x80] sm:$0xff]
    %v187 = vld [vmem:[%s2 + $0x88] sm:$0xff]
    %v188 = vld [vmem:[%s2 + $0x90] sm:$0xff]
    %v189 = vld [vmem:[%s2 + $0x98] sm:$0xff]
    %v190 = vld [vmem:[%s2 + $0xa0] sm:$0xff]
    %v191 = vld [vmem:[%s2 + $0xa8] sm:$0xff]
    %v192 = vld [vmem:[%s2 + $0xb0] sm:$0xff]
    %v193 = vld [vmem:[%s2 + $0xb8] sm:$0xff]
    %v194 = vld [vmem:[%s2 + $0xc0] sm:$0xff]
    %v195 = vld [vmem:[%s2 + $0xc8] sm:$0xff]
    %v196 = vld [vmem:[%s2 + $0xd0] sm:$0xff]
    %v197 = vld [vmem:[%s2 + $0xd8] sm:$0xff]
    %v198 = vld [vmem:[%s2 + $0xe0] sm:$0xff]
    %v199 = vld [vmem:[%s2 + $0xe8] sm:$0xff]
    %v200 = vld [vmem:[%s2 + $0xf0] sm:$0xff]
    %v201 = vld [vmem:[%s2 + $0xf8] sm:$0xff]
    %v202 = vld [vmem:[%s2 + $0x100] sm:$0xff]
    %v203 = vld [vmem:[%s2 + $0x108] sm:$0xff]
    %v204 = vld [vmem:[%s2 + $0x110] sm:$0xff]
    %v205 = vld [vmem:[%s2 + $0x118] sm:$0xff]
    %v206 = vld [vmem:[%s2 + $0x120] sm:$0xff]
    %v207 = vld [vmem:[%s2 + $0x128] sm:$0xff]
    %v208 = vld [vmem:[%s2 + $0x130] sm:$0xff]
    %v209 = vld [vmem:[%s2 + $0x138] sm:$0xff]
    %v210 = vld [vmem:[%s2 + $0x140] sm:$0xff]
    %v211 = vld [vmem:[%s2 + $0x148] sm:$0xff]
    %v212 = vld [vmem:[%s2 + $0x150] sm:$0xff]
    %v213 = vld [vmem:[%s2 + $0x158] sm:$0xff]
    %v214 = vld [vmem:[%s2 + $0x160] sm:$0xff]
    %v215 = vld [vmem:[%s2 + $0x168] sm:$0xff]
    %v216 = vld [vmem:[%s2 + $0x170] sm:$0xff]
    %v217 = vld [vmem:[%s2 + $0x178] sm:$0xff]
    %v218 = vld [vmem:[%s2 + $0x180] sm:$0xff]
    %v219 = vld [vmem:[%s2 + $0x188] sm:$0xff]
    %v220 = vld [vmem:[%s2 + $0x190] sm:$0xff]
    %v221 = vld [vmem:[%s2 + $0x198] sm:$0xff]
    %v222 = vld [vmem:[%s2 + $0x1a0] sm:$0xff]
    %v223 = vld [vmem:[%s2 + $0x1a8] sm:$0xff]
    %v224 = vld [vmem:[%s2 + $0x1b0] sm:$0xff]
    %v225 = vld [vmem:[%s2 + $0x1b8] sm:$0xff]
    %v226 = vld [vmem:[%s2 + $0x1c0] sm:$0xff]
    %v227 = vld [vmem:[%s2 + $0x1c8] sm:$0xff]
    %v228 = vld [vmem:[%s2 + $0x1d0] sm:$0xff]
    %v229 = vld [vmem:[%s2 + $0x1d8] sm:$0xff]
    %v230 = vld [vmem:[%s2 + $0x1e0] sm:$0xff]
    %v231 = vld [vmem:[%s2 + $0x1e8] sm:$0xff]
    %v232 = vld [vmem:[%s2 + $0x1f0] sm:$0xff]
    %v233 = vld [vmem:[%s2 + $0x1f8] sm:$0xff]
    %v298 = vunpack.c.l.b16 %v170
    %v299 = vunpack.c.h.b16 %v170
    %v300 = vunpack.c.l.b16 %v171
    %v301 = vunpack.c.h.b16 %v171
    %v302 = vunpack.c.l.b16 %v172
    %v303 = vunpack.c.h.b16 %v172
    %v304 = vunpack.c.l.b16 %v173
    %v305 = vunpack.c.h.b16 %v173
    %v306 = vunpack.c.l.b16 %v174
    %v307 = vunpack.c.h.b16 %v174
    %v308 = vunpack.c.l.b16 %v175
    %v309 = vunpack.c.h.b16 %v175
    %v310 = vunpack.c.l.b16 %v176
    %v311 = vunpack.c.h.b16 %v176
    %v312 = vunpack.c.l.b16 %v177
    %v313 = vunpack.c.h.b16 %v177
    %v314 = vunpack.c.l.b16 %v178
    %v315 = vunpack.c.h.b16 %v178
    %v316 = vunpack.c.l.b16 %v179
    %v317 = vunpack.c.h.b16 %v179
    %v318 = vunpack.c.l.b16 %v180
    %v319 = vunpack.c.h.b16 %v180
    %v320 = vunpack.c.l.b16 %v181
    %v321 = vunpack.c.h.b16 %v181
    %v322 = vunpack.c.l.b16 %v182
    %v323 = vunpack.c.h.b16 %v182
    %v324 = vunpack.c.l.b16 %v183
    %v325 = vunpack.c.h.b16 %v183
    %v326 = vunpack.c.l.b16 %v184
    %v327 = vunpack.c.h.b16 %v184
    %v328 = vunpack.c.l.b16 %v185
    %v329 = vunpack.c.h.b16 %v185
    %v330 = vunpack.c.l.b16 %v186
    %v331 = vunpack.c.h.b16 %v186
    %v332 = vunpack.c.l.b16 %v187
    %v333 = vunpack.c.h.b16 %v187
    %v334 = vunpack.c.l.b16 %v188
    %v335 = vunpack.c.h.b16 %v188
    %v336 = vunpack.c.l.b16 %v189
    %v337 = vunpack.c.h.b16 %v189
    %v338 = vunpack.c.l.b16 %v190
    %v339 = vunpack.c.h.b16 %v190
    %v340 = vunpack.c.l.b16 %v191
    %v341 = vunpack.c.h.b16 %v191
    %v342 = vunpack.c.l.b16 %v192
    %v343 = vunpack.c.h.b16 %v192
    %v344 = vunpack.c.l.b16 %v193
    %v345 = vunpack.c.h.b16 %v193
    %v346 = vunpack.c.l.b16 %v194
    %v347 = vunpack.c.h.b16 %v194
    %v348 = vunpack.c.l.b16 %v195
    %v349 = vunpack.c.h.b16 %v195
    %v350 = vunpack.c.l.b16 %v196
    %v351 = vunpack.c.h.b16 %v196
    %v352 = vunpack.c.l.b16 %v197
    %v353 = vunpack.c.h.b16 %v197
    %v354 = vunpack.c.l.b16 %v198
    %v355 = vunpack.c.h.b16 %v198
    %v356 = vunpack.c.l.b16 %v199
    %v357 = vunpack.c.h.b16 %v199
    %v358 = vunpack.c.l.b16 %v200
    %v359 = vunpack.c.h.b16 %v200
    %v360 = vunpack.c.l.b16 %v201
    %v361 = vunpack.c.h.b16 %v201
    %v362 = vunpack.c.l.b16 %v202
    %v363 = vunpack.c.h.b16 %v202
    %v364 = vunpack.c.l.b16 %v203
    %v365 = vunpack.c.h.b16 %v203
    %v366 = vunpack.c.l.b16 %v204
    %v367 = vunpack.c.h.b16 %v204
    %v368 = vunpack.c.l.b16 %v205
    %v369 = vunpack.c.h.b16 %v205
    %v370 = vunpack.c.l.b16 %v206
    %v371 = vunpack.c.h.b16 %v206
    %v372 = vunpack.c.l.b16 %v207
    %v373 = vunpack.c.h.b16 %v207
    %v374 = vunpack.c.l.b16 %v208
    %v375 = vunpack.c.h.b16 %v208
    %v376 = vunpack.c.l.b16 %v209
    %v377 = vunpack.c.h.b16 %v209
    %v378 = vunpack.c.l.b16 %v210
    %v379 = vunpack.c.h.b16 %v210
    %v380 = vunpack.c.l.b16 %v211
    %v381 = vunpack.c.h.b16 %v211
    %v382 = vunpack.c.l.b16 %v212
    %v383 = vunpack.c.h.b16 %v212
    %v384 = vunpack.c.l.b16 %v213
    %v385 = vunpack.c.h.b16 %v213
    %v386 = vunpack.c.l.b16 %v214
    %v387 = vunpack.c.h.b16 %v214
    %v388 = vunpack.c.l.b16 %v215
    %v389 = vunpack.c.h.b16 %v215
    %v390 = vunpack.c.l.b16 %v216
    %v391 = vunpack.c.h.b16 %v216
    %v392 = vunpack.c.l.b16 %v217
    %v393 = vunpack.c.h.b16 %v217
    %v394 = vunpack.c.l.b16 %v218
    %v395 = vunpack.c.h.b16 %v218
    %v396 = vunpack.c.l.b16 %v219
    %v397 = vunpack.c.h.b16 %v219
    %v398 = vunpack.c.l.b16 %v220
    %v399 = vunpack.c.h.b16 %v220
    %v400 = vunpack.c.l.b16 %v221
    %v401 = vunpack.c.h.b16 %v221
    %v402 = vunpack.c.l.b16 %v222
    %v403 = vunpack.c.h.b16 %v222
    %v404 = vunpack.c.l.b16 %v223
    %v405 = vunpack.c.h.b16 %v223
    %v406 = vunpack.c.l.b16 %v224
    %v407 = vunpack.c.h.b16 %v224
    %v408 = vunpack.c.l.b16 %v225
    %v409 = vunpack.c.h.b16 %v225
    %v410 = vunpack.c.l.b16 %v226
    %v411 = vunpack.c.h.b16 %v226
    %v412 = vunpack.c.l.b16 %v227
    %v413 = vunpack.c.h.b16 %v227
    %v414 = vunpack.c.l.b16 %v228
    %v415 = vunpack.c.h.b16 %v228
    %v416 = vunpack.c.l.b16 %v229
    %v417 = vunpack.c.h.b16 %v229
    %v418 = vunpack.c.l.b16 %v230
    %v419 = vunpack.c.h.b16 %v230
    %v420 = vunpack.c.l.b16 %v231
    %v421 = vunpack.c.h.b16 %v231
    %v422 = vunpack.c.l.b16 %v232
    %v423 = vunpack.c.h.b16 %v232
    %v424 = vunpack.c.l.b16 %v233
    %v425 = vunpack.c.h.b16 %v233
    %v426 = vpack.c.b16 %v302, %v298
    %v427 = vpack.c.b16 %v303, %v299
    %v428 = vpack.c.b16 %v304, %v300
    %v429 = vpack.c.b16 %v305, %v301
    %v430 = vpack.c.b16 %v310, %v306
    %v431 = vpack.c.b16 %v311, %v307
    %v432 = vpack.c.b16 %v312, %v308
    %v433 = vpack.c.b16 %v313, %v309
    %v434 = vpack.c.b16 %v318, %v314
    %v435 = vpack.c.b16 %v319, %v315
    %v436 = vpack.c.b16 %v320, %v316
    %v437 = vpack.c.b16 %v321, %v317
    %v438 = vpack.c.b16 %v326, %v322
    %v439 = vpack.c.b16 %v327, %v323
    %v440 = vpack.c.b16 %v328, %v324
    %v441 = vpack.c.b16 %v329, %v325
    %v442 = vpack.c.b16 %v334, %v330
    %v443 = vpack.c.b16 %v335, %v331
    %v444 = vpack.c.b16 %v336, %v332
    %v445 = vpack.c.b16 %v337, %v333
    %v446 = vpack.c.b16 %v342, %v338
    %v447 = vpack.c.b16 %v343, %v339
    %v448 = vpack.c.b16 %v344, %v340
    %v449 = vpack.c.b16 %v345, %v341
    %v450 = vpack.c.b16 %v350, %v346
    %v451 = vpack.c.b16 %v351, %v347
    %v452 = vpack.c.b16 %v352, %v348
    %v453 = vpack.c.b16 %v353, %v349
    %v454 = vpack.c.b16 %v358, %v354
    %v455 = vpack.c.b16 %v359, %v355
    %v456 = vpack.c.b16 %v360, %v356
    %v457 = vpack.c.b16 %v361, %v357
    %v458 = vpack.c.b16 %v366, %v362
    %v459 = vpack.c.b16 %v367, %v363
    %v460 = vpack.c.b16 %v368, %v364
    %v461 = vpack.c.b16 %v369, %v365
    %v462 = vpack.c.b16 %v374, %v370
    %v463 = vpack.c.b16 %v375, %v371
    %v464 = vpack.c.b16 %v376, %v372
    %v465 = vpack.c.b16 %v377, %v373
    %v466 = vpack.c.b16 %v382, %v378
    %v467 = vpack.c.b16 %v383, %v379
    %v468 = vpack.c.b16 %v384, %v380
    %v469 = vpack.c.b16 %v385, %v381
    %v470 = vpack.c.b16 %v390, %v386
    %v471 = vpack.c.b16 %v391, %v387
    %v472 = vpack.c.b16 %v392, %v388
    %v473 = vpack.c.b16 %v393, %v389
    %v474 = vpack.c.b16 %v398, %v394
    %v475 = vpack.c.b16 %v399, %v395
    %v476 = vpack.c.b16 %v400, %v396
    %v477 = vpack.c.b16 %v401, %v397
    %v478 = vpack.c.b16 %v406, %v402
    %v479 = vpack.c.b16 %v407, %v403
    %v480 = vpack.c.b16 %v408, %v404
    %v481 = vpack.c.b16 %v409, %v405
    %v482 = vpack.c.b16 %v414, %v410
    %v483 = vpack.c.b16 %v415, %v411
    %v484 = vpack.c.b16 %v416, %v412
    %v485 = vpack.c.b16 %v417, %v413
    %v486 = vpack.c.b16 %v422, %v418
    %v487 = vpack.c.b16 %v423, %v419
    %v488 = vpack.c.b16 %v424, %v420
    %v489 = vpack.c.b16 %v425, %v421
    %554 = vmatprep.subr.bf16.mxu0 %v427
    %555 = vmatpush1.bf16.msra.mxu0 %v426
    %556 = vmatprep.subr.bf16.mxu0 %v431
    %557 = vmatpush1.bf16.msra.mxu0 %v430
    %558 = vmatprep.subr.bf16.mxu0 %v435
    %559 = vmatpush1.bf16.msra.mxu0 %v434
    %560 = vmatprep.subr.bf16.mxu0 %v439
    %561 = vmatpush1.bf16.msra.mxu0 %v438
    %562 = vmatprep.subr.bf16.mxu0 %v443
    %563 = vmatpush1.bf16.msra.mxu0 %v442
    %564 = vmatprep.subr.bf16.mxu0 %v447
    %565 = vmatpush1.bf16.msra.mxu0 %v446
    %566 = vmatprep.subr.bf16.mxu0 %v451
    %567 = vmatpush1.bf16.msra.mxu0 %v450
    %568 = vmatprep.subr.bf16.mxu0 %v455
    %569 = vmatpush1.bf16.msra.mxu0 %v454
    %570 = vmatprep.subr.bf16.mxu0 %v459
    %571 = vmatpush1.bf16.msra.mxu0 %v458
    %572 = vmatprep.subr.bf16.mxu0 %v463
    %573 = vmatpush1.bf16.msra.mxu0 %v462
    %574 = vmatprep.subr.bf16.mxu0 %v467
    %575 = vmatpush1.bf16.msra.mxu0 %v466
    %576 = vmatprep.subr.bf16.mxu0 %v471
    %577 = vmatpush1.bf16.msra.mxu0 %v470
    %578 = vmatprep.subr.bf16.mxu0 %v475
    %579 = vmatpush1.bf16.msra.mxu0 %v474
    %580 = vmatprep.subr.bf16.mxu0 %v479
    %581 = vmatpush1.bf16.msra.mxu0 %v478
    %582 = vmatprep.subr.bf16.mxu0 %v483
    %583 = vmatpush1.bf16.msra.mxu0 %v482
    %584 = vmatprep.subr.bf16.mxu0 %v487
    %585 = vmatpush1.bf16.msra.mxu0 %v486
    %586 = vmatprep.mubr.bf16.mxu0 %v169
    %587 = vmatmul.mubr.bf16.gmra.mrb[0].mxu0 %v168
    %v588 = vpop.f32.mrb[0].mxu0
    %v589 = vadd.f32 0.0, %v588
    %v590 = vpop.f32.mrb[0].mxu0
    %v591 = vadd.f32 0.0, %v590
    %v592 = vpop.f32.mrb[0].mxu0
    %v593 = vpop.f32.mrb[0].mxu0
    %594 = vdwg.mxu0
    %595 = vmatprep.subr.bf16.mxu0 %v429
    %596 = vmatpush1.bf16.msra.mxu0 %v428
    %597 = vmatprep.subr.bf16.mxu0 %v433
    %598 = vmatpush1.bf16.msra.mxu0 %v432
    %599 = vmatprep.subr.bf16.mxu0 %v437
    %600 = vmatpush1.bf16.msra.mxu0 %v436
    %601 = vmatprep.subr.bf16.mxu0 %v441
    %602 = vmatpush1.bf16.msra.mxu0 %v440
    %603 = vmatprep.subr.bf16.mxu0 %v445
    %604 = vmatpush1.bf16.msra.mxu0 %v444
    %605 = vmatprep.subr.bf16.mxu0 %v449
    %606 = vmatpush1.bf16.msra.mxu0 %v448
    %607 = vmatprep.subr.bf16.mxu0 %v453
    %608 = vmatpush1.bf16.msra.mxu0 %v452
    %609 = vmatprep.subr.bf16.mxu0 %v457
    %610 = vmatpush1.bf16.msra.mxu0 %v456
    %611 = vmatprep.subr.bf16.mxu0 %v461
    %612 = vmatpush1.bf16.msra.mxu0 %v460
    %613 = vmatprep.subr.bf16.mxu0 %v465
    %614 = vmatpush1.bf16.msra.mxu0 %v464
    %615 = vmatprep.subr.bf16.mxu0 %v469
    %616 = vmatpush1.bf16.msra.mxu0 %v468
    %617 = vmatprep.subr.bf16.mxu0 %v473
    %618 = vmatpush1.bf16.msra.mxu0 %v472
    %619 = vmatprep.subr.bf16.mxu0 %v477
    %620 = vmatpush1.bf16.msra.mxu0 %v476
    %621 = vmatprep.subr.bf16.mxu0 %v481
    %622 = vmatpush1.bf16.msra.mxu0 %v480
    %623 = vmatprep.subr.bf16.mxu0 %v485
    %624 = vmatpush1.bf16.msra.mxu0 %v484
    %625 = vmatprep.subr.bf16.mxu0 %v489
    %626 = vmatpush1.bf16.msra.mxu0 %v488
    %627 = vmatprep.mubr.bf16.mxu0 %v169
    %628 = vmatmul.mubr.bf16.gmra.mrb[0].mxu0 %v168
    %v629 = vpop.f32.mrb[0].mxu0
    %v630 = vadd.f32 0.0, %v629
    %v631 = vpop.f32.mrb[0].mxu0
    %v632 = vadd.f32 0.0, %v631
    %v633 = vpop.f32.mrb[0].mxu0
    %v634 = vpop.f32.mrb[0].mxu0
    %635 = vdwg.mxu0
    %v636 = vrot.slane %v589, 4
    %v637 = vadd.f32 %v589, %v636
    %v638 = vrot.slane %v637, 2
    %v639 = vadd.f32 %v637, %v638
    %v640 = vrot.slane %v639, 1
    %v641 = vadd.f32 %v639, %v640
    %v642 = vrot.slane %v591, 4
    %v643 = vadd.f32 %v591, %v642
    %v644 = vrot.slane %v643, 2
    %v645 = vadd.f32 %v643, %v644
    %v646 = vrot.slane %v645, 1
    %v647 = vadd.f32 %v645, %v646
    %v648 = vrot.slane %v630, 4
    %v649 = vadd.f32 %v630, %v648
    %v650 = vrot.slane %v649, 2
    %v651 = vadd.f32 %v649, %v650
    %v652 = vrot.slane %v651, 1
    %v653 = vadd.f32 %v651, %v652
    %v654 = vrot.slane %v632, 4
    %v655 = vadd.f32 %v632, %v654
    %v656 = vrot.slane %v655, 2
    %v657 = vadd.f32 %v655, %v656
    %v658 = vrot.slane %v657, 1
    %v659 = vadd.f32 %v657, %v658
    %v660 = vmul.f32 %v641, %v137
    %v661 = vmul.f32 %v647, %v137
    %v662 = vmul.f32 %v653, %v137
    %v663 = vmul.f32 %v659, %v137
    %v664 = vsub.f32 %v589, %v660
    %v665 = vsub.f32 %v591, %v661
    %v666 = vsub.f32 %v630, %v662
    %v667 = vsub.f32 %v632, %v663
    %v668 = vmul.f32 %v664, %v664
    %v669 = vmul.f32 %v665, %v665
    %v670 = vmul.f32 %v666, %v666
    %v671 = vmul.f32 %v667, %v667
    %v672 = vrot.slane %v668, 4
    %v673 = vadd.f32 %v668, %v672
    %v674 = vrot.slane %v673, 2
    %v675 = vadd.f32 %v673, %v674
    %v676 = vrot.slane %v675, 1
    %v677 = vadd.f32 %v675, %v676
    %v678 = vrot.slane %v669, 4
    %v679 = vadd.f32 %v669, %v678
    %v680 = vrot.slane %v679, 2
    %v681 = vadd.f32 %v679, %v680
    %v682 = vrot.slane %v681, 1
    %v683 = vadd.f32 %v681, %v682
    %v684 = vrot.slane %v670, 4
    %v685 = vadd.f32 %v670, %v684
    %v686 = vrot.slane %v685, 2
    %v687 = vadd.f32 %v685, %v686
    %v688 = vrot.slane %v687, 1
    %v689 = vadd.f32 %v687, %v688
    %v690 = vrot.slane %v671, 4
    %v691 = vadd.f32 %v671, %v690
    %v692 = vrot.slane %v691, 2
    %v693 = vadd.f32 %v691, %v692
    %v694 = vrot.slane %v693, 1
    %v695 = vadd.f32 %v693, %v694
    %v696 = vmul.f32 %v677, %v137
    %v697 = vmul.f32 %v683, %v137
    %v698 = vmul.f32 %v689, %v137
    %v699 = vmul.f32 %v695, %v137
    %v700 = vadd.f32 %v696, 1e-05
    %v701 = vadd.f32 %v697, 1e-05
    %v702 = vadd.f32 %v698, 1e-05
    %v703 = vadd.f32 %v699, 1e-05
    %v704 = vrsqrt.pop %v700
    %v705 = vrsqrt.pop %v701
    %v706 = vrsqrt.pop %v702
    %v707 = vrsqrt.pop %v703
    %v708 = vmul.f32 %v664, %v704
    %v709 = vmul.f32 %v665, %v705
    %v710 = vmul.f32 %v666, %v706
    %v711 = vmul.f32 %v667, %v707
    %v712 = vmul.f32 %v708, 0.2
    %v713 = vmul.f32 %v709, 0.2
    %v714 = vmul.f32 %v710, 0.2
    %v715 = vmul.f32 %v711, 0.2
    %v716 = vmax.f32 %v708, %v712
    %v717 = vmax.f32 %v709, %v713
    %v718 = vmax.f32 %v710, %v714
    %v719 = vmax.f32 %v711, %v715
    %v720 = vpack.c.bf16 %v716, %v716
    %v721 = vpack.c.bf16 %v717, %v717
    %v722 = vpack.c.bf16 %v718, %v718
    %v723 = vpack.c.bf16 %v719, %v719
    %v724 = vld [vmem:[%s3] sm:$0xff]
    %v725 = vld [vmem:[%s3 + $0x8] sm:$0xff]
    %v726 = vld [vmem:[%s3 + $0x10] sm:$0xff]
    %v727 = vld [vmem:[%s3 + $0x18] sm:$0xf]
    %v728 = vld [vmem:[%s3 + $0x1c] sm:$0xff]
    %v729 = vld [vmem:[%s3 + $0x24] sm:$0xff]
    %v730 = vld [vmem:[%s3 + $0x2c] sm:$0xff]
    %v731 = vld [vmem:[%s3 + $0x34] sm:$0xf]
    %v732 = vld [vmem:[%s3 + $0x38] sm:$0xff]
    %v733 = vld [vmem:[%s3 + $0x40] sm:$0xff]
    %v734 = vld [vmem:[%s3 + $0x48] sm:$0xff]
    %v735 = vld [vmem:[%s3 + $0x50] sm:$0xf]
    %v736 = vld [vmem:[%s3 + $0x54] sm:$0xff]
    %v737 = vld [vmem:[%s3 + $0x5c] sm:$0xff]
    %v738 = vld [vmem:[%s3 + $0x64] sm:$0xff]
    %v739 = vld [vmem:[%s3 + $0x6c] sm:$0xf]
    %v740 = vld [vmem:[%s3 + $0x70] sm:$0xff]
    %v741 = vld [vmem:[%s3 + $0x78] sm:$0xff]
    %v742 = vld [vmem:[%s3 + $0x80] sm:$0xff]
    %v743 = vld [vmem:[%s3 + $0x88] sm:$0xf]
    %v744 = vld [vmem:[%s3 + $0x8c] sm:$0xff]
    %v745 = vld [vmem:[%s3 + $0x94] sm:$0xff]
    %v746 = vld [vmem:[%s3 + $0x9c] sm:$0xff]
    %v747 = vld [vmem:[%s3 + $0xa4] sm:$0xf]
    %v748 = vld [vmem:[%s3 + $0xa8] sm:$0xff]
    %v749 = vld [vmem:[%s3 + $0xb0] sm:$0xff]
    %v750 = vld [vmem:[%s3 + $0xb8] sm:$0xff]
    %v751 = vld [vmem:[%s3 + $0xc0] sm:$0xf]
    %v752 = vld [vmem:[%s3 + $0xc4] sm:$0xff]
    %v753 = vld [vmem:[%s3 + $0xcc] sm:$0xff]
    %v754 = vld [vmem:[%s3 + $0xd4] sm:$0xff]
    %v755 = vld [vmem:[%s3 + $0xdc] sm:$0xf]
    %v756 = vld [vmem:[%s3 + $0xe0] sm:$0xff]
    %v757 = vld [vmem:[%s3 + $0xe8] sm:$0xff]
    %v758 = vld [vmem:[%s3 + $0xf0] sm:$0xff]
    %v759 = vld [vmem:[%s3 + $0xf8] sm:$0xf]
    %v760 = vld [vmem:[%s3 + $0xfc] sm:$0xff]
    %v761 = vld [vmem:[%s3 + $0x104] sm:$0xff]
    %v762 = vld [vmem:[%s3 + $0x10c] sm:$0xff]
    %v763 = vld [vmem:[%s3 + $0x114] sm:$0xf]
    %v764 = vld [vmem:[%s3 + $0x118] sm:$0xff]
    %v765 = vld [vmem:[%s3 + $0x120] sm:$0xff]
    %v766 = vld [vmem:[%s3 + $0x128] sm:$0xff]
    %v767 = vld [vmem:[%s3 + $0x130] sm:$0xf]
    %v768 = vld [vmem:[%s3 + $0x134] sm:$0xff]
    %v769 = vld [vmem:[%s3 + $0x13c] sm:$0xff]
    %v770 = vld [vmem:[%s3 + $0x144] sm:$0xff]
    %v771 = vld [vmem:[%s3 + $0x14c] sm:$0xf]
    %v772 = vld [vmem:[%s3 + $0x150] sm:$0xff]
    %v773 = vld [vmem:[%s3 + $0x158] sm:$0xff]
    %v774 = vld [vmem:[%s3 + $0x160] sm:$0xff]
    %v775 = vld [vmem:[%s3 + $0x168] sm:$0xf]
    %v776 = vld [vmem:[%s3 + $0x16c] sm:$0xff]
    %v777 = vld [vmem:[%s3 + $0x174] sm:$0xff]
    %v778 = vld [vmem:[%s3 + $0x17c] sm:$0xff]
    %v779 = vld [vmem:[%s3 + $0x184] sm:$0xf]
    %v780 = vld [vmem:[%s3 + $0x188] sm:$0xff]
    %v781 = vld [vmem:[%s3 + $0x190] sm:$0xff]
    %v782 = vld [vmem:[%s3 + $0x198] sm:$0xff]
    %v783 = vld [vmem:[%s3 + $0x1a0] sm:$0xf]
    %v784 = vld [vmem:[%s3 + $0x1a4] sm:$0xff]
    %v785 = vld [vmem:[%s3 + $0x1ac] sm:$0xff]
    %v786 = vld [vmem:[%s3 + $0x1b4] sm:$0xff]
    %v787 = vld [vmem:[%s3 + $0x1bc] sm:$0xf]
    %v788 = vld [vmem:[%s3 + $0x1c0] sm:$0xff]
    %v789 = vld [vmem:[%s3 + $0x1c8] sm:$0xff]
    %v790 = vld [vmem:[%s3 + $0x1d0] sm:$0xff]
    %v791 = vld [vmem:[%s3 + $0x1d8] sm:$0xf]
    %v792 = vld [vmem:[%s3 + $0x1dc] sm:$0xff]
    %v793 = vld [vmem:[%s3 + $0x1e4] sm:$0xff]
    %v794 = vld [vmem:[%s3 + $0x1ec] sm:$0xff]
    %v795 = vld [vmem:[%s3 + $0x1f4] sm:$0xf]
    %v796 = vld [vmem:[%s3 + $0x1f8] sm:$0xff]
    %v797 = vld [vmem:[%s3 + $0x200] sm:$0xff]
    %v798 = vld [vmem:[%s3 + $0x208] sm:$0xff]
    %v799 = vld [vmem:[%s3 + $0x210] sm:$0xf]
    %v800 = vld [vmem:[%s3 + $0x214] sm:$0xff]
    %v801 = vld [vmem:[%s3 + $0x21c] sm:$0xff]
    %v802 = vld [vmem:[%s3 + $0x224] sm:$0xff]
    %v803 = vld [vmem:[%s3 + $0x22c] sm:$0xf]
    %v804 = vld [vmem:[%s3 + $0x230] sm:$0xff]
    %v805 = vld [vmem:[%s3 + $0x238] sm:$0xff]
    %v806 = vld [vmem:[%s3 + $0x240] sm:$0xff]
    %v807 = vld [vmem:[%s3 + $0x248] sm:$0xf]
    %v808 = vld [vmem:[%s3 + $0x24c] sm:$0xff]
    %v809 = vld [vmem:[%s3 + $0x254] sm:$0xff]
    %v810 = vld [vmem:[%s3 + $0x25c] sm:$0xff]
    %v811 = vld [vmem:[%s3 + $0x264] sm:$0xf]
    %v812 = vld [vmem:[%s3 + $0x268] sm:$0xff]
    %v813 = vld [vmem:[%s3 + $0x270] sm:$0xff]
    %v814 = vld [vmem:[%s3 + $0x278] sm:$0xff]
    %v815 = vld [vmem:[%s3 + $0x280] sm:$0xf]
    %v816 = vld [vmem:[%s3 + $0x284] sm:$0xff]
    %v817 = vld [vmem:[%s3 + $0x28c] sm:$0xff]
    %v818 = vld [vmem:[%s3 + $0x294] sm:$0xff]
    %v819 = vld [vmem:[%s3 + $0x29c] sm:$0xf]
    %v820 = vld [vmem:[%s3 + $0x2a0] sm:$0xff]
    %v821 = vld [vmem:[%s3 + $0x2a8] sm:$0xff]
    %v822 = vld [vmem:[%s3 + $0x2b0] sm:$0xff]
    %v823 = vld [vmem:[%s3 + $0x2b8] sm:$0xf]
    %v824 = vld [vmem:[%s3 + $0x2bc] sm:$0xff]
    %v825 = vld [vmem:[%s3 + $0x2c4] sm:$0xff]
    %v826 = vld [vmem:[%s3 + $0x2cc] sm:$0xff]
    %v827 = vld [vmem:[%s3 + $0x2d4] sm:$0xf]
    %v828 = vld [vmem:[%s3 + $0x2d8] sm:$0xff]
    %v829 = vld [vmem:[%s3 + $0x2e0] sm:$0xff]
    %v830 = vld [vmem:[%s3 + $0x2e8] sm:$0xff]
    %v831 = vld [vmem:[%s3 + $0x2f0] sm:$0xf]
    %v832 = vld [vmem:[%s3 + $0x2f4] sm:$0xff]
    %v833 = vld [vmem:[%s3 + $0x2fc] sm:$0xff]
    %v834 = vld [vmem:[%s3 + $0x304] sm:$0xff]
    %v835 = vld [vmem:[%s3 + $0x30c] sm:$0xf]
    %v836 = vld [vmem:[%s3 + $0x310] sm:$0xff]
    %v837 = vld [vmem:[%s3 + $0x318] sm:$0xff]
    %v838 = vld [vmem:[%s3 + $0x320] sm:$0xff]
    %v839 = vld [vmem:[%s3 + $0x328] sm:$0xf]
    %v840 = vld [vmem:[%s3 + $0x32c] sm:$0xff]
    %v841 = vld [vmem:[%s3 + $0x334] sm:$0xff]
    %v842 = vld [vmem:[%s3 + $0x33c] sm:$0xff]
    %v843 = vld [vmem:[%s3 + $0x344] sm:$0xf]
    %v844 = vld [vmem:[%s3 + $0x348] sm:$0xff]
    %v845 = vld [vmem:[%s3 + $0x350] sm:$0xff]
    %v846 = vld [vmem:[%s3 + $0x358] sm:$0xff]
    %v847 = vld [vmem:[%s3 + $0x360] sm:$0xf]
    %v848 = vld [vmem:[%s3 + $0x364] sm:$0xff]
    %v849 = vld [vmem:[%s3 + $0x36c] sm:$0xff]
    %v850 = vld [vmem:[%s3 + $0x374] sm:$0xff]
    %v851 = vld [vmem:[%s3 + $0x37c] sm:$0xf]
    %v852 = vld [vmem:[%s3 + $0x380] sm:$0xff]
    %v853 = vld [vmem:[%s3 + $0x388] sm:$0xff]
    %v854 = vld [vmem:[%s3 + $0x390] sm:$0xff]
    %v855 = vld [vmem:[%s3 + $0x398] sm:$0xf]
    %v856 = vld [vmem:[%s3 + $0x39c] sm:$0xff]
    %v857 = vld [vmem:[%s3 + $0x3a4] sm:$0xff]
    %v858 = vld [vmem:[%s3 + $0x3ac] sm:$0xff]
    %v859 = vld [vmem:[%s3 + $0x3b4] sm:$0xf]
    %v860 = vld [vmem:[%s3 + $0x3b8] sm:$0xff]
    %v861 = vld [vmem:[%s3 + $0x3c0] sm:$0xff]
    %v862 = vld [vmem:[%s3 + $0x3c8] sm:$0xff]
    %v863 = vld [vmem:[%s3 + $0x3d0] sm:$0xf]
    %v864 = vld [vmem:[%s3 + $0x3d4] sm:$0xff]
    %v865 = vld [vmem:[%s3 + $0x3dc] sm:$0xff]
    %v866 = vld [vmem:[%s3 + $0x3e4] sm:$0xff]
    %v867 = vld [vmem:[%s3 + $0x3ec] sm:$0xf]
    %v868 = vld [vmem:[%s3 + $0x3f0] sm:$0xff]
    %v869 = vld [vmem:[%s3 + $0x3f8] sm:$0xff]
    %v870 = vld [vmem:[%s3 + $0x400] sm:$0xff]
    %v871 = vld [vmem:[%s3 + $0x408] sm:$0xf]
    %v872 = vld [vmem:[%s3 + $0x40c] sm:$0xff]
    %v873 = vld [vmem:[%s3 + $0x414] sm:$0xff]
    %v874 = vld [vmem:[%s3 + $0x41c] sm:$0xff]
    %v875 = vld [vmem:[%s3 + $0x424] sm:$0xf]
    %v876 = vld [vmem:[%s3 + $0x428] sm:$0xff]
    %v877 = vld [vmem:[%s3 + $0x430] sm:$0xff]
    %v878 = vld [vmem:[%s3 + $0x438] sm:$0xff]
    %v879 = vld [vmem:[%s3 + $0x440] sm:$0xf]
    %v880 = vld [vmem:[%s3 + $0x444] sm:$0xff]
    %v881 = vld [vmem:[%s3 + $0x44c] sm:$0xff]
    %v882 = vld [vmem:[%s3 + $0x454] sm:$0xff]
    %v883 = vld [vmem:[%s3 + $0x45c] sm:$0xf]
    %v884 = vld [vmem:[%s3 + $0x460] sm:$0xff]
    %v885 = vld [vmem:[%s3 + $0x468] sm:$0xff]
    %v886 = vld [vmem:[%s3 + $0x470] sm:$0xff]
    %v887 = vld [vmem:[%s3 + $0x478] sm:$0xf]
    %v888 = vld [vmem:[%s3 + $0x47c] sm:$0xff]
    %v889 = vld [vmem:[%s3 + $0x484] sm:$0xff]
    %v890 = vld [vmem:[%s3 + $0x48c] sm:$0xff]
    %v891 = vld [vmem:[%s3 + $0x494] sm:$0xf]
    %v892 = vld [vmem:[%s3 + $0x498] sm:$0xff]
    %v893 = vld [vmem:[%s3 + $0x4a0] sm:$0xff]
    %v894 = vld [vmem:[%s3 + $0x4a8] sm:$0xff]
    %v895 = vld [vmem:[%s3 + $0x4b0] sm:$0xf]
    %v896 = vld [vmem:[%s3 + $0x4b4] sm:$0xff]
    %v897 = vld [vmem:[%s3 + $0x4bc] sm:$0xff]
    %v898 = vld [vmem:[%s3 + $0x4c4] sm:$0xff]
    %v899 = vld [vmem:[%s3 + $0x4cc] sm:$0xf]
    %v900 = vld [vmem:[%s3 + $0x4d0] sm:$0xff]
    %v901 = vld [vmem:[%s3 + $0x4d8] sm:$0xff]
    %v902 = vld [vmem:[%s3 + $0x4e0] sm:$0xff]
    %v903 = vld [vmem:[%s3 + $0x4e8] sm:$0xf]
    %v904 = vld [vmem:[%s3 + $0x4ec] sm:$0xff]
    %v905 = vld [vmem:[%s3 + $0x4f4] sm:$0xff]
    %v906 = vld [vmem:[%s3 + $0x4fc] sm:$0xff]
    %v907 = vld [vmem:[%s3 + $0x504] sm:$0xf]
    %v908 = vld [vmem:[%s3 + $0x508] sm:$0xff]
    %v909 = vld [vmem:[%s3 + $0x510] sm:$0xff]
    %v910 = vld [vmem:[%s3 + $0x518] sm:$0xff]
    %v911 = vld [vmem:[%s3 + $0x520] sm:$0xf]
    %v912 = vld [vmem:[%s3 + $0x524] sm:$0xff]
    %v913 = vld [vmem:[%s3 + $0x52c] sm:$0xff]
    %v914 = vld [vmem:[%s3 + $0x534] sm:$0xff]
    %v915 = vld [vmem:[%s3 + $0x53c] sm:$0xf]
    %v916 = vld [vmem:[%s3 + $0x540] sm:$0xff]
    %v917 = vld [vmem:[%s3 + $0x548] sm:$0xff]
    %v918 = vld [vmem:[%s3 + $0x550] sm:$0xff]
    %v919 = vld [vmem:[%s3 + $0x558] sm:$0xf]
    %v920 = vld [vmem:[%s3 + $0x55c] sm:$0xff]
    %v921 = vld [vmem:[%s3 + $0x564] sm:$0xff]
    %v922 = vld [vmem:[%s3 + $0x56c] sm:$0xff]
    %v923 = vld [vmem:[%s3 + $0x574] sm:$0xf]
    %v924 = vld [vmem:[%s3 + $0x578] sm:$0xff]
    %v925 = vld [vmem:[%s3 + $0x580] sm:$0xff]
    %v926 = vld [vmem:[%s3 + $0x588] sm:$0xff]
    %v927 = vld [vmem:[%s3 + $0x590] sm:$0xf]
    %v928 = vld [vmem:[%s3 + $0x594] sm:$0xff]
    %v929 = vld [vmem:[%s3 + $0x59c] sm:$0xff]
    %v930 = vld [vmem:[%s3 + $0x5a4] sm:$0xff]
    %v931 = vld [vmem:[%s3 + $0x5ac] sm:$0xf]
    %v932 = vld [vmem:[%s3 + $0x5b0] sm:$0xff]
    %v933 = vld [vmem:[%s3 + $0x5b8] sm:$0xff]
    %v934 = vld [vmem:[%s3 + $0x5c0] sm:$0xff]
    %v935 = vld [vmem:[%s3 + $0x5c8] sm:$0xf]
    %v936 = vld [vmem:[%s3 + $0x5cc] sm:$0xff]
    %v937 = vld [vmem:[%s3 + $0x5d4] sm:$0xff]
    %v938 = vld [vmem:[%s3 + $0x5dc] sm:$0xff]
    %v939 = vld [vmem:[%s3 + $0x5e4] sm:$0xf]
    %v940 = vld [vmem:[%s3 + $0x5e8] sm:$0xff]
    %v941 = vld [vmem:[%s3 + $0x5f0] sm:$0xff]
    %v942 = vld [vmem:[%s3 + $0x5f8] sm:$0xff]
    %v943 = vld [vmem:[%s3 + $0x600] sm:$0xf]
    %v944 = vld [vmem:[%s3 + $0x604] sm:$0xff]
    %v945 = vld [vmem:[%s3 + $0x60c] sm:$0xff]
    %v946 = vld [vmem:[%s3 + $0x614] sm:$0xff]
    %v947 = vld [vmem:[%s3 + $0x61c] sm:$0xf]
    %v948 = vld [vmem:[%s3 + $0x620] sm:$0xff]
    %v949 = vld [vmem:[%s3 + $0x628] sm:$0xff]
    %v950 = vld [vmem:[%s3 + $0x630] sm:$0xff]
    %v951 = vld [vmem:[%s3 + $0x638] sm:$0xf]
    %v952 = vld [vmem:[%s3 + $0x63c] sm:$0xff]
    %v953 = vld [vmem:[%s3 + $0x644] sm:$0xff]
    %v954 = vld [vmem:[%s3 + $0x64c] sm:$0xff]
    %v955 = vld [vmem:[%s3 + $0x654] sm:$0xf]
    %v956 = vld [vmem:[%s3 + $0x658] sm:$0xff]
    %v957 = vld [vmem:[%s3 + $0x660] sm:$0xff]
    %v958 = vld [vmem:[%s3 + $0x668] sm:$0xff]
    %v959 = vld [vmem:[%s3 + $0x670] sm:$0xf]
    %v960 = vld [vmem:[%s3 + $0x674] sm:$0xff]
    %v961 = vld [vmem:[%s3 + $0x67c] sm:$0xff]
    %v962 = vld [vmem:[%s3 + $0x684] sm:$0xff]
    %v963 = vld [vmem:[%s3 + $0x68c] sm:$0xf]
    %v964 = vld [vmem:[%s3 + $0x690] sm:$0xff]
    %v965 = vld [vmem:[%s3 + $0x698] sm:$0xff]
    %v966 = vld [vmem:[%s3 + $0x6a0] sm:$0xff]
    %v967 = vld [vmem:[%s3 + $0x6a8] sm:$0xf]
    %v968 = vld [vmem:[%s3 + $0x6ac] sm:$0xff]
    %v969 = vld [vmem:[%s3 + $0x6b4] sm:$0xff]
    %v970 = vld [vmem:[%s3 + $0x6bc] sm:$0xff]
    %v971 = vld [vmem:[%s3 + $0x6c4] sm:$0xf]
    %v972 = vld [vmem:[%s3 + $0x6c8] sm:$0xff]
    %v973 = vld [vmem:[%s3 + $0x6d0] sm:$0xff]
    %v974 = vld [vmem:[%s3 + $0x6d8] sm:$0xff]
    %v975 = vld [vmem:[%s3 + $0x6e0] sm:$0xf]
    %v976 = vld [vmem:[%s3 + $0x6e4] sm:$0xff]
    %v977 = vld [vmem:[%s3 + $0x6ec] sm:$0xff]
    %v978 = vld [vmem:[%s3 + $0x6f4] sm:$0xff]
    %v979 = vld [vmem:[%s3 + $0x6fc] sm:$0xf]
    %v1236 = vunpack.c.l.b16 %v724
    %v1237 = vunpack.c.h.b16 %v724
    %v1238 = vunpack.c.l.b16 %v725
    %v1239 = vunpack.c.h.b16 %v725
    %v1240 = vunpack.c.l.b16 %v726
    %v1241 = vunpack.c.h.b16 %v726
    %v1242 = vunpack.c.l.b16 %v727
    %v1243 = vunpack.c.l.b16 %v728
    %v1244 = vunpack.c.h.b16 %v728
    %v1245 = vunpack.c.l.b16 %v729
    %v1246 = vunpack.c.h.b16 %v729
    %v1247 = vunpack.c.l.b16 %v730
    %v1248 = vunpack.c.h.b16 %v730
    %v1249 = vunpack.c.l.b16 %v731
    %v1250 = vunpack.c.l.b16 %v732
    %v1251 = vunpack.c.h.b16 %v732
    %v1252 = vunpack.c.l.b16 %v733
    %v1253 = vunpack.c.h.b16 %v733
    %v1254 = vunpack.c.l.b16 %v734
    %v1255 = vunpack.c.h.b16 %v734
    %v1256 = vunpack.c.l.b16 %v735
    %v1257 = vunpack.c.l.b16 %v736
    %v1258 = vunpack.c.h.b16 %v736
    %v1259 = vunpack.c.l.b16 %v737
    %v1260 = vunpack.c.h.b16 %v737
    %v1261 = vunpack.c.l.b16 %v738
    %v1262 = vunpack.c.h.b16 %v738
    %v1263 = vunpack.c.l.b16 %v739
    %v1264 = vunpack.c.l.b16 %v740
    %v1265 = vunpack.c.h.b16 %v740
    %v1266 = vunpack.c.l.b16 %v741
    %v1267 = vunpack.c.h.b16 %v741
    %v1268 = vunpack.c.l.b16 %v742
    %v1269 = vunpack.c.h.b16 %v742
    %v1270 = vunpack.c.l.b16 %v743
    %v1271 = vunpack.c.l.b16 %v744
    %v1272 = vunpack.c.h.b16 %v744
    %v1273 = vunpack.c.l.b16 %v745
    %v1274 = vunpack.c.h.b16 %v745
    %v1275 = vunpack.c.l.b16 %v746
    %v1276 = vunpack.c.h.b16 %v746
    %v1277 = vunpack.c.l.b16 %v747
    %v1278 = vunpack.c.l.b16 %v748
    %v1279 = vunpack.c.h.b16 %v748
    %v1280 = vunpack.c.l.b16 %v749
    %v1281 = vunpack.c.h.b16 %v749
    %v1282 = vunpack.c.l.b16 %v750
    %v1283 = vunpack.c.h.b16 %v750
    %v1284 = vunpack.c.l.b16 %v751
    %v1285 = vunpack.c.l.b16 %v752
    %v1286 = vunpack.c.h.b16 %v752
    %v1287 = vunpack.c.l.b16 %v753
    %v1288 = vunpack.c.h.b16 %v753
    %v1289 = vunpack.c.l.b16 %v754
    %v1290 = vunpack.c.h.b16 %v754
    %v1291 = vunpack.c.l.b16 %v755
    %v1292 = vunpack.c.l.b16 %v756
    %v1293 = vunpack.c.h.b16 %v756
    %v1294 = vunpack.c.l.b16 %v757
    %v1295 = vunpack.c.h.b16 %v757
    %v1296 = vunpack.c.l.b16 %v758
    %v1297 = vunpack.c.h.b16 %v758
    %v1298 = vunpack.c.l.b16 %v759
    %v1299 = vunpack.c.l.b16 %v760
    %v1300 = vunpack.c.h.b16 %v760
    %v1301 = vunpack.c.l.b16 %v761
    %v1302 = vunpack.c.h.b16 %v761
    %v1303 = vunpack.c.l.b16 %v762
    %v1304 = vunpack.c.h.b16 %v762
    %v1305 = vunpack.c.l.b16 %v763
    %v1306 = vunpack.c.l.b16 %v764
    %v1307 = vunpack.c.h.b16 %v764
    %v1308 = vunpack.c.l.b16 %v765
    %v1309 = vunpack.c.h.b16 %v765
    %v1310 = vunpack.c.l.b16 %v766
    %v1311 = vunpack.c.h.b16 %v766
    %v1312 = vunpack.c.l.b16 %v767
    %v1313 = vunpack.c.l.b16 %v768
    %v1314 = vunpack.c.h.b16 %v768
    %v1315 = vunpack.c.l.b16 %v769
    %v1316 = vunpack.c.h.b16 %v769
    %v1317 = vunpack.c.l.b16 %v770
    %v1318 = vunpack.c.h.b16 %v770
    %v1319 = vunpack.c.l.b16 %v771
    %v1320 = vunpack.c.l.b16 %v772
    %v1321 = vunpack.c.h.b16 %v772
    %v1322 = vunpack.c.l.b16 %v773
    %v1323 = vunpack.c.h.b16 %v773
    %v1324 = vunpack.c.l.b16 %v774
    %v1325 = vunpack.c.h.b16 %v774
    %v1326 = vunpack.c.l.b16 %v775
    %v1327 = vunpack.c.l.b16 %v776
    %v1328 = vunpack.c.h.b16 %v776
    %v1329 = vunpack.c.l.b16 %v777
    %v1330 = vunpack.c.h.b16 %v777
    %v1331 = vunpack.c.l.b16 %v778
    %v1332 = vunpack.c.h.b16 %v778
    %v1333 = vunpack.c.l.b16 %v779
    %v1334 = vunpack.c.l.b16 %v780
    %v1335 = vunpack.c.h.b16 %v780
    %v1336 = vunpack.c.l.b16 %v781
    %v1337 = vunpack.c.h.b16 %v781
    %v1338 = vunpack.c.l.b16 %v782
    %v1339 = vunpack.c.h.b16 %v782
    %v1340 = vunpack.c.l.b16 %v783
    %v1341 = vunpack.c.l.b16 %v784
    %v1342 = vunpack.c.h.b16 %v784
    %v1343 = vunpack.c.l.b16 %v785
    %v1344 = vunpack.c.h.b16 %v785
    %v1345 = vunpack.c.l.b16 %v786
    %v1346 = vunpack.c.h.b16 %v786
    %v1347 = vunpack.c.l.b16 %v787
    %v1348 = vunpack.c.l.b16 %v788
    %v1349 = vunpack.c.h.b16 %v788
    %v1350 = vunpack.c.l.b16 %v789
    %v1351 = vunpack.c.h.b16 %v789
    %v1352 = vunpack.c.l.b16 %v790
    %v1353 = vunpack.c.h.b16 %v790
    %v1354 = vunpack.c.l.b16 %v791
    %v1355 = vunpack.c.l.b16 %v792
    %v1356 = vunpack.c.h.b16 %v792
    %v1357 = vunpack.c.l.b16 %v793
    %v1358 = vunpack.c.h.b16 %v793
    %v1359 = vunpack.c.l.b16 %v794
    %v1360 = vunpack.c.h.b16 %v794
    %v1361 = vunpack.c.l.b16 %v795
    %v1362 = vunpack.c.l.b16 %v796
    %v1363 = vunpack.c.h.b16 %v796
    %v1364 = vunpack.c.l.b16 %v797
    %v1365 = vunpack.c.h.b16 %v797
    %v1366 = vunpack.c.l.b16 %v798
    %v1367 = vunpack.c.h.b16 %v798
    %v1368 = vunpack.c.l.b16 %v799
    %v1369 = vunpack.c.l.b16 %v800
    %v1370 = vunpack.c.h.b16 %v800
    %v1371 = vunpack.c.l.b16 %v801
    %v1372 = vunpack.c.h.b16 %v801
    %v1373 = vunpack.c.l.b16 %v802
    %v1374 = vunpack.c.h.b16 %v802
    %v1375 = vunpack.c.l.b16 %v803
    %v1376 = vunpack.c.l.b16 %v804
    %v1377 = vunpack.c.h.b16 %v804
    %v1378 = vunpack.c.l.b16 %v805
    %v1379 = vunpack.c.h.b16 %v805
    %v1380 = vunpack.c.l.b16 %v806
    %v1381 = vunpack.c.h.b16 %v806
    %v1382 = vunpack.c.l.b16 %v807
    %v1383 = vunpack.c.l.b16 %v808
    %v1384 = vunpack.c.h.b16 %v808
    %v1385 = vunpack.c.l.b16 %v809
    %v1386 = vunpack.c.h.b16 %v809
    %v1387 = vunpack.c.l.b16 %v810
    %v1388 = vunpack.c.h.b16 %v810
    %v1389 = vunpack.c.l.b16 %v811
    %v1390 = vunpack.c.l.b16 %v812
    %v1391 = vunpack.c.h.b16 %v812
    %v1392 = vunpack.c.l.b16 %v813
    %v1393 = vunpack.c.h.b16 %v813
    %v1394 = vunpack.c.l.b16 %v814
    %v1395 = vunpack.c.h.b16 %v814
    %v1396 = vunpack.c.l.b16 %v815
    %v1397 = vunpack.c.l.b16 %v816
    %v1398 = vunpack.c.h.b16 %v816
    %v1399 = vunpack.c.l.b16 %v817
    %v1400 = vunpack.c.h.b16 %v817
    %v1401 = vunpack.c.l.b16 %v818
    %v1402 = vunpack.c.h.b16 %v818
    %v1403 = vunpack.c.l.b16 %v819
    %v1404 = vunpack.c.l.b16 %v820
    %v1405 = vunpack.c.h.b16 %v820
    %v1406 = vunpack.c.l.b16 %v821
    %v1407 = vunpack.c.h.b16 %v821
    %v1408 = vunpack.c.l.b16 %v822
    %v1409 = vunpack.c.h.b16 %v822
    %v1410 = vunpack.c.l.b16 %v823
    %v1411 = vunpack.c.l.b16 %v824
    %v1412 = vunpack.c.h.b16 %v824
    %v1413 = vunpack.c.l.b16 %v825
    %v1414 = vunpack.c.h.b16 %v825
    %v1415 = vunpack.c.l.b16 %v826
    %v1416 = vunpack.c.h.b16 %v826
    %v1417 = vunpack.c.l.b16 %v827
    %v1418 = vunpack.c.l.b16 %v828
    %v1419 = vunpack.c.h.b16 %v828
    %v1420 = vunpack.c.l.b16 %v829
    %v1421 = vunpack.c.h.b16 %v829
    %v1422 = vunpack.c.l.b16 %v830
    %v1423 = vunpack.c.h.b16 %v830
    %v1424 = vunpack.c.l.b16 %v831
    %v1425 = vunpack.c.l.b16 %v832
    %v1426 = vunpack.c.h.b16 %v832
    %v1427 = vunpack.c.l.b16 %v833
    %v1428 = vunpack.c.h.b16 %v833
    %v1429 = vunpack.c.l.b16 %v834
    %v1430 = vunpack.c.h.b16 %v834
    %v1431 = vunpack.c.l.b16 %v835
    %v1432 = vunpack.c.l.b16 %v836
    %v1433 = vunpack.c.h.b16 %v836
    %v1434 = vunpack.c.l.b16 %v837
    %v1435 = vunpack.c.h.b16 %v837
    %v1436 = vunpack.c.l.b16 %v838
    %v1437 = vunpack.c.h.b16 %v838
    %v1438 = vunpack.c.l.b16 %v839
    %v1439 = vunpack.c.l.b16 %v840
    %v1440 = vunpack.c.h.b16 %v840
    %v1441 = vunpack.c.l.b16 %v841
    %v1442 = vunpack.c.h.b16 %v841
    %v1443 = vunpack.c.l.b16 %v842
    %v1444 = vunpack.c.h.b16 %v842
    %v1445 = vunpack.c.l.b16 %v843
    %v1446 = vunpack.c.l.b16 %v844
    %v1447 = vunpack.c.h.b16 %v844
    %v1448 = vunpack.c.l.b16 %v845
    %v1449 = vunpack.c.h.b16 %v845
    %v1450 = vunpack.c.l.b16 %v846
    %v1451 = vunpack.c.h.b16 %v846
    %v1452 = vunpack.c.l.b16 %v847
    %v1453 = vunpack.c.l.b16 %v848
    %v1454 = vunpack.c.h.b16 %v848
    %v1455 = vunpack.c.l.b16 %v849
    %v1456 = vunpack.c.h.b16 %v849
    %v1457 = vunpack.c.l.b16 %v850
    %v1458 = vunpack.c.h.b16 %v850
    %v1459 = vunpack.c.l.b16 %v851
    %v1460 = vunpack.c.l.b16 %v852
    %v1461 = vunpack.c.h.b16 %v852
    %v1462 = vunpack.c.l.b16 %v853
    %v1463 = vunpack.c.h.b16 %v853
    %v1464 = vunpack.c.l.b16 %v854
    %v1465 = vunpack.c.h.b16 %v854
    %v1466 = vunpack.c.l.b16 %v855
    %v1467 = vunpack.c.l.b16 %v856
    %v1468 = vunpack.c.h.b16 %v856
    %v1469 = vunpack.c.l.b16 %v857
    %v1470 = vunpack.c.h.b16 %v857
    %v1471 = vunpack.c.l.b16 %v858
    %v1472 = vunpack.c.h.b16 %v858
    %v1473 = vunpack.c.l.b16 %v859
    %v1474 = vunpack.c.l.b16 %v860
    %v1475 = vunpack.c.h.b16 %v860
    %v1476 = vunpack.c.l.b16 %v861
    %v1477 = vunpack.c.h.b16 %v861
    %v1478 = vunpack.c.l.b16 %v862
    %v1479 = vunpack.c.h.b16 %v862
    %v1480 = vunpack.c.l.b16 %v863
    %v1481 = vunpack.c.l.b16 %v864
    %v1482 = vunpack.c.h.b16 %v864
    %v1483 = vunpack.c.l.b16 %v865
    %v1484 = vunpack.c.h.b16 %v865
    %v1485 = vunpack.c.l.b16 %v866
    %v1486 = vunpack.c.h.b16 %v866
    %v1487 = vunpack.c.l.b16 %v867
    %v1488 = vunpack.c.l.b16 %v868
    %v1489 = vunpack.c.h.b16 %v868
    %v1490 = vunpack.c.l.b16 %v869
    %v1491 = vunpack.c.h.b16 %v869
    %v1492 = vunpack.c.l.b16 %v870
    %v1493 = vunpack.c.h.b16 %v870
    %v1494 = vunpack.c.l.b16 %v871
    %v1495 = vunpack.c.l.b16 %v872
    %v1496 = vunpack.c.h.b16 %v872
    %v1497 = vunpack.c.l.b16 %v873
    %v1498 = vunpack.c.h.b16 %v873
    %v1499 = vunpack.c.l.b16 %v874
    %v1500 = vunpack.c.h.b16 %v874
    %v1501 = vunpack.c.l.b16 %v875
    %v1502 = vunpack.c.l.b16 %v876
    %v1503 = vunpack.c.h.b16 %v876
    %v1504 = vunpack.c.l.b16 %v877
    %v1505 = vunpack.c.h.b16 %v877
    %v1506 = vunpack.c.l.b16 %v878
    %v1507 = vunpack.c.h.b16 %v878
    %v1508 = vunpack.c.l.b16 %v879
    %v1509 = vunpack.c.l.b16 %v880
    %v1510 = vunpack.c.h.b16 %v880
    %v1511 = vunpack.c.l.b16 %v881
    %v1512 = vunpack.c.h.b16 %v881
    %v1513 = vunpack.c.l.b16 %v882
    %v1514 = vunpack.c.h.b16 %v882
    %v1515 = vunpack.c.l.b16 %v883
    %v1516 = vunpack.c.l.b16 %v884
    %v1517 = vunpack.c.h.b16 %v884
    %v1518 = vunpack.c.l.b16 %v885
    %v1519 = vunpack.c.h.b16 %v885
    %v1520 = vunpack.c.l.b16 %v886
    %v1521 = vunpack.c.h.b16 %v886
    %v1522 = vunpack.c.l.b16 %v887
    %v1523 = vunpack.c.l.b16 %v888
    %v1524 = vunpack.c.h.b16 %v888
    %v1525 = vunpack.c.l.b16 %v889
    %v1526 = vunpack.c.h.b16 %v889
    %v1527 = vunpack.c.l.b16 %v890
    %v1528 = vunpack.c.h.b16 %v890
    %v1529 = vunpack.c.l.b16 %v891
    %v1530 = vunpack.c.l.b16 %v892
    %v1531 = vunpack.c.h.b16 %v892
    %v1532 = vunpack.c.l.b16 %v893
    %v1533 = vunpack.c.h.b16 %v893
    %v1534 = vunpack.c.l.b16 %v894
    %v1535 = vunpack.c.h.b16 %v894
    %v1536 = vunpack.c.l.b16 %v895
    %v1537 = vunpack.c.l.b16 %v896
    %v1538 = vunpack.c.h.b16 %v896
    %v1539 = vunpack.c.l.b16 %v897
    %v1540 = vunpack.c.h.b16 %v897
    %v1541 = vunpack.c.l.b16 %v898
    %v1542 = vunpack.c.h.b16 %v898
    %v1543 = vunpack.c.l.b16 %v899
    %v1544 = vunpack.c.l.b16 %v900
    %v1545 = vunpack.c.h.b16 %v900
    %v1546 = vunpack.c.l.b16 %v901
    %v1547 = vunpack.c.h.b16 %v901
    %v1548 = vunpack.c.l.b16 %v902
    %v1549 = vunpack.c.h.b16 %v902
    %v1550 = vunpack.c.l.b16 %v903
    %v1551 = vunpack.c.l.b16 %v904
    %v1552 = vunpack.c.h.b16 %v904
    %v1553 = vunpack.c.l.b16 %v905
    %v1554 = vunpack.c.h.b16 %v905
    %v1555 = vunpack.c.l.b16 %v906
    %v1556 = vunpack.c.h.b16 %v906
    %v1557 = vunpack.c.l.b16 %v907
    %v1558 = vunpack.c.l.b16 %v908
    %v1559 = vunpack.c.h.b16 %v908
    %v1560 = vunpack.c.l.b16 %v909
    %v1561 = vunpack.c.h.b16 %v909
    %v1562 = vunpack.c.l.b16 %v910
    %v1563 = vunpack.c.h.b16 %v910
    %v1564 = vunpack.c.l.b16 %v911
    %v1565 = vunpack.c.l.b16 %v912
    %v1566 = vunpack.c.h.b16 %v912
    %v1567 = vunpack.c.l.b16 %v913
    %v1568 = vunpack.c.h.b16 %v913
    %v1569 = vunpack.c.l.b16 %v914
    %v1570 = vunpack.c.h.b16 %v914
    %v1571 = vunpack.c.l.b16 %v915
    %v1572 = vunpack.c.l.b16 %v916
    %v1573 = vunpack.c.h.b16 %v916
    %v1574 = vunpack.c.l.b16 %v917
    %v1575 = vunpack.c.h.b16 %v917
    %v1576 = vunpack.c.l.b16 %v918
    %v1577 = vunpack.c.h.b16 %v918
    %v1578 = vunpack.c.l.b16 %v919
    %v1579 = vunpack.c.l.b16 %v920
    %v1580 = vunpack.c.h.b16 %v920
    %v1581 = vunpack.c.l.b16 %v921
    %v1582 = vunpack.c.h.b16 %v921
    %v1583 = vunpack.c.l.b16 %v922
    %v1584 = vunpack.c.h.b16 %v922
    %v1585 = vunpack.c.l.b16 %v923
    %v1586 = vunpack.c.l.b16 %v924
    %v1587 = vunpack.c.h.b16 %v924
    %v1588 = vunpack.c.l.b16 %v925
    %v1589 = vunpack.c.h.b16 %v925
    %v1590 = vunpack.c.l.b16 %v926
    %v1591 = vunpack.c.h.b16 %v926
    %v1592 = vunpack.c.l.b16 %v927
    %v1593 = vunpack.c.l.b16 %v928
    %v1594 = vunpack.c.h.b16 %v928
    %v1595 = vunpack.c.l.b16 %v929
    %v1596 = vunpack.c.h.b16 %v929
    %v1597 = vunpack.c.l.b16 %v930
    %v1598 = vunpack.c.h.b16 %v930
    %v1599 = vunpack.c.l.b16 %v931
    %v1600 = vunpack.c.l.b16 %v932
    %v1601 = vunpack.c.h.b16 %v932
    %v1602 = vunpack.c.l.b16 %v933
    %v1603 = vunpack.c.h.b16 %v933
    %v1604 = vunpack.c.l.b16 %v934
    %v1605 = vunpack.c.h.b16 %v934
    %v1606 = vunpack.c.l.b16 %v935
    %v1607 = vunpack.c.l.b16 %v936
    %v1608 = vunpack.c.h.b16 %v936
    %v1609 = vunpack.c.l.b16 %v937
    %v1610 = vunpack.c.h.b16 %v937
    %v1611 = vunpack.c.l.b16 %v938
    %v1612 = vunpack.c.h.b16 %v938
    %v1613 = vunpack.c.l.b16 %v939
    %v1614 = vunpack.c.l.b16 %v940
    %v1615 = vunpack.c.h.b16 %v940
    %v1616 = vunpack.c.l.b16 %v941
    %v1617 = vunpack.c.h.b16 %v941
    %v1618 = vunpack.c.l.b16 %v942
    %v1619 = vunpack.c.h.b16 %v942
    %v1620 = vunpack.c.l.b16 %v943
    %v1621 = vunpack.c.l.b16 %v944
    %v1622 = vunpack.c.h.b16 %v944
    %v1623 = vunpack.c.l.b16 %v945
    %v1624 = vunpack.c.h.b16 %v945
    %v1625 = vunpack.c.l.b16 %v946
    %v1626 = vunpack.c.h.b16 %v946
    %v1627 = vunpack.c.l.b16 %v947
    %v1628 = vunpack.c.l.b16 %v948
    %v1629 = vunpack.c.h.b16 %v948
    %v1630 = vunpack.c.l.b16 %v949
    %v1631 = vunpack.c.h.b16 %v949
    %v1632 = vunpack.c.l.b16 %v950
    %v1633 = vunpack.c.h.b16 %v950
    %v1634 = vunpack.c.l.b16 %v951
    %v1635 = vunpack.c.l.b16 %v952
    %v1636 = vunpack.c.h.b16 %v952
    %v1637 = vunpack.c.l.b16 %v953
    %v1638 = vunpack.c.h.b16 %v953
    %v1639 = vunpack.c.l.b16 %v954
    %v1640 = vunpack.c.h.b16 %v954
    %v1641 = vunpack.c.l.b16 %v955
    %v1642 = vunpack.c.l.b16 %v956
    %v1643 = vunpack.c.h.b16 %v956
    %v1644 = vunpack.c.l.b16 %v957
    %v1645 = vunpack.c.h.b16 %v957
    %v1646 = vunpack.c.l.b16 %v958
    %v1647 = vunpack.c.h.b16 %v958
    %v1648 = vunpack.c.l.b16 %v959
    %v1649 = vunpack.c.l.b16 %v960
    %v1650 = vunpack.c.h.b16 %v960
    %v1651 = vunpack.c.l.b16 %v961
    %v1652 = vunpack.c.h.b16 %v961
    %v1653 = vunpack.c.l.b16 %v962
    %v1654 = vunpack.c.h.b16 %v962
    %v1655 = vunpack.c.l.b16 %v963
    %v1656 = vunpack.c.l.b16 %v964
    %v1657 = vunpack.c.h.b16 %v964
    %v1658 = vunpack.c.l.b16 %v965
    %v1659 = vunpack.c.h.b16 %v965
    %v1660 = vunpack.c.l.b16 %v966
    %v1661 = vunpack.c.h.b16 %v966
    %v1662 = vunpack.c.l.b16 %v967
    %v1663 = vunpack.c.l.b16 %v968
    %v1664 = vunpack.c.h.b16 %v968
    %v1665 = vunpack.c.l.b16 %v969
    %v1666 = vunpack.c.h.b16 %v969
    %v1667 = vunpack.c.l.b16 %v970
    %v1668 = vunpack.c.h.b16 %v970
    %v1669 = vunpack.c.l.b16 %v971
    %v1670 = vunpack.c.l.b16 %v972
    %v1671 = vunpack.c.h.b16 %v972
    %v1672 = vunpack.c.l.b16 %v973
    %v1673 = vunpack.c.h.b16 %v973
    %v1674 = vunpack.c.l.b16 %v974
    %v1675 = vunpack.c.h.b16 %v974
    %v1676 = vunpack.c.l.b16 %v975
    %v1677 = vunpack.c.l.b16 %v976
    %v1678 = vunpack.c.h.b16 %v976
    %v1679 = vunpack.c.l.b16 %v977
    %v1680 = vunpack.c.h.b16 %v977
    %v1681 = vunpack.c.l.b16 %v978
    %v1682 = vunpack.c.h.b16 %v978
    %v1683 = vunpack.c.l.b16 %v979
    %v1684 = vpack.c.b16 %v1243, %v1236
    %v1685 = vpack.c.b16 %v1244, %v1237
    %v1686 = vpack.c.b16 %v1245, %v1238
    %v1687 = vpack.c.b16 %v1246, %v1239
    %v1688 = vpack.c.b16 %v1247, %v1240
    %v1689 = vpack.c.b16 %v1248, %v1241
    %v1690 = vpack.c.b16 %v1249, %v1242
    %v1691 = vpack.c.b16 %v1257, %v1250
    %v1692 = vpack.c.b16 %v1258, %v1251
    %v1693 = vpack.c.b16 %v1259, %v1252
    %v1694 = vpack.c.b16 %v1260, %v1253
    %v1695 = vpack.c.b16 %v1261, %v1254
    %v1696 = vpack.c.b16 %v1262, %v1255
    %v1697 = vpack.c.b16 %v1263, %v1256
    %v1698 = vpack.c.b16 %v1271, %v1264
    %v1699 = vpack.c.b16 %v1272, %v1265
    %v1700 = vpack.c.b16 %v1273, %v1266
    %v1701 = vpack.c.b16 %v1274, %v1267
    %v1702 = vpack.c.b16 %v1275, %v1268
    %v1703 = vpack.c.b16 %v1276, %v1269
    %v1704 = vpack.c.b16 %v1277, %v1270
    %v1705 = vpack.c.b16 %v1285, %v1278
    %v1706 = vpack.c.b16 %v1286, %v1279
    %v1707 = vpack.c.b16 %v1287, %v1280
    %v1708 = vpack.c.b16 %v1288, %v1281
    %v1709 = vpack.c.b16 %v1289, %v1282
    %v1710 = vpack.c.b16 %v1290, %v1283
    %v1711 = vpack.c.b16 %v1291, %v1284
    %v1712 = vpack.c.b16 %v1299, %v1292
    %v1713 = vpack.c.b16 %v1300, %v1293
    %v1714 = vpack.c.b16 %v1301, %v1294
    %v1715 = vpack.c.b16 %v1302, %v1295
    %v1716 = vpack.c.b16 %v1303, %v1296
    %v1717 = vpack.c.b16 %v1304, %v1297
    %v1718 = vpack.c.b16 %v1305, %v1298
    %v1719 = vpack.c.b16 %v1313, %v1306
    %v1720 = vpack.c.b16 %v1314, %v1307
    %v1721 = vpack.c.b16 %v1315, %v1308
    %v1722 = vpack.c.b16 %v1316, %v1309
    %v1723 = vpack.c.b16 %v1317, %v1310
    %v1724 = vpack.c.b16 %v1318, %v1311
    %v1725 = vpack.c.b16 %v1319, %v1312
    %v1726 = vpack.c.b16 %v1327, %v1320
    %v1727 = vpack.c.b16 %v1328, %v1321
    %v1728 = vpack.c.b16 %v1329, %v1322
    %v1729 = vpack.c.b16 %v1330, %v1323
    %v1730 = vpack.c.b16 %v1331, %v1324
    %v1731 = vpack.c.b16 %v1332, %v1325
    %v1732 = vpack.c.b16 %v1333, %v1326
    %v1733 = vpack.c.b16 %v1341, %v1334
    %v1734 = vpack.c.b16 %v1342, %v1335
    %v1735 = vpack.c.b16 %v1343, %v1336
    %v1736 = vpack.c.b16 %v1344, %v1337
    %v1737 = vpack.c.b16 %v1345, %v1338
    %v1738 = vpack.c.b16 %v1346, %v1339
    %v1739 = vpack.c.b16 %v1347, %v1340
    %v1740 = vpack.c.b16 %v1355, %v1348
    %v1741 = vpack.c.b16 %v1356, %v1349
    %v1742 = vpack.c.b16 %v1357, %v1350
    %v1743 = vpack.c.b16 %v1358, %v1351
    %v1744 = vpack.c.b16 %v1359, %v1352
    %v1745 = vpack.c.b16 %v1360, %v1353
    %v1746 = vpack.c.b16 %v1361, %v1354
    %v1747 = vpack.c.b16 %v1369, %v1362
    %v1748 = vpack.c.b16 %v1370, %v1363
    %v1749 = vpack.c.b16 %v1371, %v1364
    %v1750 = vpack.c.b16 %v1372, %v1365
    %v1751 = vpack.c.b16 %v1373, %v1366
    %v1752 = vpack.c.b16 %v1374, %v1367
    %v1753 = vpack.c.b16 %v1375, %v1368
    %v1754 = vpack.c.b16 %v1383, %v1376
    %v1755 = vpack.c.b16 %v1384, %v1377
    %v1756 = vpack.c.b16 %v1385, %v1378
    %v1757 = vpack.c.b16 %v1386, %v1379
    %v1758 = vpack.c.b16 %v1387, %v1380
    %v1759 = vpack.c.b16 %v1388, %v1381
    %v1760 = vpack.c.b16 %v1389, %v1382
    %v1761 = vpack.c.b16 %v1397, %v1390
    %v1762 = vpack.c.b16 %v1398, %v1391
    %v1763 = vpack.c.b16 %v1399, %v1392
    %v1764 = vpack.c.b16 %v1400, %v1393
    %v1765 = vpack.c.b16 %v1401, %v1394
    %v1766 = vpack.c.b16 %v1402, %v1395
    %v1767 = vpack.c.b16 %v1403, %v1396
    %v1768 = vpack.c.b16 %v1411, %v1404
    %v1769 = vpack.c.b16 %v1412, %v1405
    %v1770 = vpack.c.b16 %v1413, %v1406
    %v1771 = vpack.c.b16 %v1414, %v1407
    %v1772 = vpack.c.b16 %v1415, %v1408
    %v1773 = vpack.c.b16 %v1416, %v1409
    %v1774 = vpack.c.b16 %v1417, %v1410
    %v1775 = vpack.c.b16 %v1425, %v1418
    %v1776 = vpack.c.b16 %v1426, %v1419
    %v1777 = vpack.c.b16 %v1427, %v1420
    %v1778 = vpack.c.b16 %v1428, %v1421
    %v1779 = vpack.c.b16 %v1429, %v1422
    %v1780 = vpack.c.b16 %v1430, %v1423
    %v1781 = vpack.c.b16 %v1431, %v1424
    %v1782 = vpack.c.b16 %v1439, %v1432
    %v1783 = vpack.c.b16 %v1440, %v1433
    %v1784 = vpack.c.b16 %v1441, %v1434
    %v1785 = vpack.c.b16 %v1442, %v1435
    %v1786 = vpack.c.b16 %v1443, %v1436
    %v1787 = vpack.c.b16 %v1444, %v1437
    %v1788 = vpack.c.b16 %v1445, %v1438
    %v1789 = vpack.c.b16 %v1453, %v1446
    %v1790 = vpack.c.b16 %v1454, %v1447
    %v1791 = vpack.c.b16 %v1455, %v1448
    %v1792 = vpack.c.b16 %v1456, %v1449
    %v1793 = vpack.c.b16 %v1457, %v1450
    %v1794 = vpack.c.b16 %v1458, %v1451
    %v1795 = vpack.c.b16 %v1459, %v1452
    %v1796 = vpack.c.b16 %v1467, %v1460
    %v1797 = vpack.c.b16 %v1468, %v1461
    %v1798 = vpack.c.b16 %v1469, %v1462
    %v1799 = vpack.c.b16 %v1470, %v1463
    %v1800 = vpack.c.b16 %v1471, %v1464
    %v1801 = vpack.c.b16 %v1472, %v1465
    %v1802 = vpack.c.b16 %v1473, %v1466
    %v1803 = vpack.c.b16 %v1481, %v1474
    %v1804 = vpack.c.b16 %v1482, %v1475
    %v1805 = vpack.c.b16 %v1483, %v1476
    %v1806 = vpack.c.b16 %v1484, %v1477
    %v1807 = vpack.c.b16 %v1485, %v1478
    %v1808 = vpack.c.b16 %v1486, %v1479
    %v1809 = vpack.c.b16 %v1487, %v1480
    %v1810 = vpack.c.b16 %v1495, %v1488
    %v1811 = vpack.c.b16 %v1496, %v1489
    %v1812 = vpack.c.b16 %v1497, %v1490
    %v1813 = vpack.c.b16 %v1498, %v1491
    %v1814 = vpack.c.b16 %v1499, %v1492
    %v1815 = vpack.c.b16 %v1500, %v1493
    %v1816 = vpack.c.b16 %v1501, %v1494
    %v1817 = vpack.c.b16 %v1509, %v1502
    %v1818 = vpack.c.b16 %v1510, %v1503
    %v1819 = vpack.c.b16 %v1511, %v1504
    %v1820 = vpack.c.b16 %v1512, %v1505
    %v1821 = vpack.c.b16 %v1513, %v1506
    %v1822 = vpack.c.b16 %v1514, %v1507
    %v1823 = vpack.c.b16 %v1515, %v1508
    %v1824 = vpack.c.b16 %v1523, %v1516
    %v1825 = vpack.c.b16 %v1524, %v1517
    %v1826 = vpack.c.b16 %v1525, %v1518
    %v1827 = vpack.c.b16 %v1526, %v1519
    %v1828 = vpack.c.b16 %v1527, %v1520
    %v1829 = vpack.c.b16 %v1528, %v1521
    %v1830 = vpack.c.b16 %v1529, %v1522
    %v1831 = vpack.c.b16 %v1537, %v1530
    %v1832 = vpack.c.b16 %v1538, %v1531
    %v1833 = vpack.c.b16 %v1539, %v1532
    %v1834 = vpack.c.b16 %v1540, %v1533
    %v1835 = vpack.c.b16 %v1541, %v1534
    %v1836 = vpack.c.b16 %v1542, %v1535
    %v1837 = vpack.c.b16 %v1543, %v1536
    %v1838 = vpack.c.b16 %v1551, %v1544
    %v1839 = vpack.c.b16 %v1552, %v1545
    %v1840 = vpack.c.b16 %v1553, %v1546
    %v1841 = vpack.c.b16 %v1554, %v1547
    %v1842 = vpack.c.b16 %v1555, %v1548
    %v1843 = vpack.c.b16 %v1556, %v1549
    %v1844 = vpack.c.b16 %v1557, %v1550
    %v1845 = vpack.c.b16 %v1565, %v1558
    %v1846 = vpack.c.b16 %v1566, %v1559
    %v1847 = vpack.c.b16 %v1567, %v1560
    %v1848 = vpack.c.b16 %v1568, %v1561
    %v1849 = vpack.c.b16 %v1569, %v1562
    %v1850 = vpack.c.b16 %v1570, %v1563
    %v1851 = vpack.c.b16 %v1571, %v1564
    %v1852 = vpack.c.b16 %v1579, %v1572
    %v1853 = vpack.c.b16 %v1580, %v1573
    %v1854 = vpack.c.b16 %v1581, %v1574
    %v1855 = vpack.c.b16 %v1582, %v1575
    %v1856 = vpack.c.b16 %v1583, %v1576
    %v1857 = vpack.c.b16 %v1584, %v1577
    %v1858 = vpack.c.b16 %v1585, %v1578
    %v1859 = vpack.c.b16 %v1593, %v1586
    %v1860 = vpack.c.b16 %v1594, %v1587
    %v1861 = vpack.c.b16 %v1595, %v1588
    %v1862 = vpack.c.b16 %v1596, %v1589
    %v1863 = vpack.c.b16 %v1597, %v1590
    %v1864 = vpack.c.b16 %v1598, %v1591
    %v1865 = vpack.c.b16 %v1599, %v1592
    %v1866 = vpack.c.b16 %v1607, %v1600
    %v1867 = vpack.c.b16 %v1608, %v1601
    %v1868 = vpack.c.b16 %v1609, %v1602
    %v1869 = vpack.c.b16 %v1610, %v1603
    %v1870 = vpack.c.b16 %v1611, %v1604
    %v1871 = vpack.c.b16 %v1612, %v1605
    %v1872 = vpack.c.b16 %v1613, %v1606
    %v1873 = vpack.c.b16 %v1621, %v1614
    %v1874 = vpack.c.b16 %v1622, %v1615
    %v1875 = vpack.c.b16 %v1623, %v1616
    %v1876 = vpack.c.b16 %v1624, %v1617
    %v1877 = vpack.c.b16 %v1625, %v1618
    %v1878 = vpack.c.b16 %v1626, %v1619
    %v1879 = vpack.c.b16 %v1627, %v1620
    %v1880 = vpack.c.b16 %v1635, %v1628
    %v1881 = vpack.c.b16 %v1636, %v1629
    %v1882 = vpack.c.b16 %v1637, %v1630
    %v1883 = vpack.c.b16 %v1638, %v1631
    %v1884 = vpack.c.b16 %v1639, %v1632
    %v1885 = vpack.c.b16 %v1640, %v1633
    %v1886 = vpack.c.b16 %v1641, %v1634
    %v1887 = vpack.c.b16 %v1649, %v1642
    %v1888 = vpack.c.b16 %v1650, %v1643
    %v1889 = vpack.c.b16 %v1651, %v1644
    %v1890 = vpack.c.b16 %v1652, %v1645
    %v1891 = vpack.c.b16 %v1653, %v1646
    %v1892 = vpack.c.b16 %v1654, %v1647
    %v1893 = vpack.c.b16 %v1655, %v1648
    %v1894 = vpack.c.b16 %v1663, %v1656
    %v1895 = vpack.c.b16 %v1664, %v1657
    %v1896 = vpack.c.b16 %v1665, %v1658
    %v1897 = vpack.c.b16 %v1666, %v1659
    %v1898 = vpack.c.b16 %v1667, %v1660
    %v1899 = vpack.c.b16 %v1668, %v1661
    %v1900 = vpack.c.b16 %v1669, %v1662
    %v1901 = vpack.c.b16 %v1677, %v1670
    %v1902 = vpack.c.b16 %v1678, %v1671
    %v1903 = vpack.c.b16 %v1679, %v1672
    %v1904 = vpack.c.b16 %v1680, %v1673
    %v1905 = vpack.c.b16 %v1681, %v1674
    %v1906 = vpack.c.b16 %v1682, %v1675
    %v1907 = vpack.c.b16 %v1683, %v1676
    %2132 = vmatprep.subr.bf16.mxu0 %v1685
    %2133 = vmatpush1.bf16.msra.mxu0 %v1684
    %2134 = vmatprep.subr.bf16.mxu0 %v1692
    %2135 = vmatpush1.bf16.msra.mxu0 %v1691
    %2136 = vmatprep.subr.bf16.mxu0 %v1699
    %2137 = vmatpush1.bf16.msra.mxu0 %v1698
    %2138 = vmatprep.subr.bf16.mxu0 %v1706
    %2139 = vmatpush1.bf16.msra.mxu0 %v1705
    %2140 = vmatprep.subr.bf16.mxu0 %v1713
    %2141 = vmatpush1.bf16.msra.mxu0 %v1712
    %2142 = vmatprep.subr.bf16.mxu0 %v1720
    %2143 = vmatpush1.bf16.msra.mxu0 %v1719
    %2144 = vmatprep.subr.bf16.mxu0 %v1727
    %2145 = vmatpush1.bf16.msra.mxu0 %v1726
    %2146 = vmatprep.subr.bf16.mxu0 %v1734
    %2147 = vmatpush1.bf16.msra.mxu0 %v1733
    %2148 = vmatprep.subr.bf16.mxu0 %v1741
    %2149 = vmatpush1.bf16.msra.mxu0 %v1740
    %2150 = vmatprep.subr.bf16.mxu0 %v1748
    %2151 = vmatpush1.bf16.msra.mxu0 %v1747
    %2152 = vmatprep.subr.bf16.mxu0 %v1755
    %2153 = vmatpush1.bf16.msra.mxu0 %v1754
    %2154 = vmatprep.subr.bf16.mxu0 %v1762
    %2155 = vmatpush1.bf16.msra.mxu0 %v1761
    %2156 = vmatprep.subr.bf16.mxu0 %v1769
    %2157 = vmatpush1.bf16.msra.mxu0 %v1768
    %2158 = vmatprep.subr.bf16.mxu0 %v1776
    %2159 = vmatpush1.bf16.msra.mxu0 %v1775
    %2160 = vmatprep.subr.bf16.mxu0 %v1783
    %2161 = vmatpush1.bf16.msra.mxu0 %v1782
    %2162 = vmatprep.subr.bf16.mxu0 %v1790
    %2163 = vmatpush1.bf16.msra.mxu0 %v1789
    %2164 = vmatprep.mubr.bf16.mxu0 %v721
    %2165 = vmatmul.mubr.bf16.gmra.mrb[0].mxu0 %v720
    %v2166 = vpop.f32.mrb[0].mxu0
    %v2167 = vadd.f32 0.0, %v2166
    %v2168 = vpop.f32.mrb[0].mxu0
    %v2169 = vadd.f32 0.0, %v2168
    %v2170 = vpop.f32.mrb[0].mxu0
    %v2171 = vpop.f32.mrb[0].mxu0
    %2172 = vdwg.mxu0
    %2173 = vmatprep.subr.bf16.mxu0 %v1797
    %2174 = vmatpush1.bf16.msra.mxu0 %v1796
    %2175 = vmatprep.subr.bf16.mxu0 %v1804
    %2176 = vmatpush1.bf16.msra.mxu0 %v1803
    %2177 = vmatprep.subr.bf16.mxu0 %v1811
    %2178 = vmatpush1.bf16.msra.mxu0 %v1810
    %2179 = vmatprep.subr.bf16.mxu0 %v1818
    %2180 = vmatpush1.bf16.msra.mxu0 %v1817
    %2181 = vmatprep.subr.bf16.mxu0 %v1825
    %2182 = vmatpush1.bf16.msra.mxu0 %v1824
    %2183 = vmatprep.subr.bf16.mxu0 %v1832
    %2184 = vmatpush1.bf16.msra.mxu0 %v1831
    %2185 = vmatprep.subr.bf16.mxu0 %v1839
    %2186 = vmatpush1.bf16.msra.mxu0 %v1838
    %2187 = vmatprep.subr.bf16.mxu0 %v1846
    %2188 = vmatpush1.bf16.msra.mxu0 %v1845
    %2189 = vmatprep.subr.bf16.mxu0 %v1853
    %2190 = vmatpush1.bf16.msra.mxu0 %v1852
    %2191 = vmatprep.subr.bf16.mxu0 %v1860
    %2192 = vmatpush1.bf16.msra.mxu0 %v1859
    %2193 = vmatprep.subr.bf16.mxu0 %v1867
    %2194 = vmatpush1.bf16.msra.mxu0 %v1866
    %2195 = vmatprep.subr.bf16.mxu0 %v1874
    %2196 = vmatpush1.bf16.msra.mxu0 %v1873
    %2197 = vmatprep.subr.bf16.mxu0 %v1881
    %2198 = vmatpush1.bf16.msra.mxu0 %v1880
    %2199 = vmatprep.subr.bf16.mxu0 %v1888
    %2200 = vmatpush1.bf16.msra.mxu0 %v1887
    %2201 = vmatprep.subr.bf16.mxu0 %v1895
    %2202 = vmatpush1.bf16.msra.mxu0 %v1894
    %2203 = vmatprep.subr.bf16.mxu0 %v1902
    %2204 = vmatpush1.bf16.msra.mxu0 %v1901
    %2205 = vmatprep.mubr.bf16.mxu0 %v723
    %2206 = vmatmul.mubr.bf16.gmra.mrb[0].mxu0 %v722
    %v2207 = vpop.f32.mrb[0].mxu0
    %v2208 = vadd.f32 %v2167, %v2207
    %v2209 = vpop.f32.mrb[0].mxu0
    %v2210 = vadd.f32 %v2169, %v2209
    %v2211 = vpop.f32.mrb[0].mxu0
    %v2212 = vpop.f32.mrb[0].mxu0
    %2213 = vdwg.mxu0
    %2214 = vmatprep.subr.bf16.mxu0 %v1687
    %2215 = vmatpush1.bf16.msra.mxu0 %v1686
    %2216 = vmatprep.subr.bf16.mxu0 %v1694
    %2217 = vmatpush1.bf16.msra.mxu0 %v1693
    %2218 = vmatprep.subr.bf16.mxu0 %v1701
    %2219 = vmatpush1.bf16.msra.mxu0 %v1700
    %2220 = vmatprep.subr.bf16.mxu0 %v1708
    %2221 = vmatpush1.bf16.msra.mxu0 %v1707
    %2222 = vmatprep.subr.bf16.mxu0 %v1715
    %2223 = vmatpush1.bf16.msra.mxu0 %v1714
    %2224 = vmatprep.subr.bf16.mxu0 %v1722
    %2225 = vmatpush1.bf16.msra.mxu0 %v1721
    %2226 = vmatprep.subr.bf16.mxu0 %v1729
    %2227 = vmatpush1.bf16.msra.mxu0 %v1728
    %2228 = vmatprep.subr.bf16.mxu0 %v1736
    %2229 = vmatpush1.bf16.msra.mxu0 %v1735
    %2230 = vmatprep.subr.bf16.mxu0 %v1743
    %2231 = vmatpush1.bf16.msra.mxu0 %v1742
    %2232 = vmatprep.subr.bf16.mxu0 %v1750
    %2233 = vmatpush1.bf16.msra.mxu0 %v1749
    %2234 = vmatprep.subr.bf16.mxu0 %v1757
    %2235 = vmatpush1.bf16.msra.mxu0 %v1756
    %2236 = vmatprep.subr.bf16.mxu0 %v1764
    %2237 = vmatpush1.bf16.msra.mxu0 %v1763
    %2238 = vmatprep.subr.bf16.mxu0 %v1771
    %2239 = vmatpush1.bf16.msra.mxu0 %v1770
    %2240 = vmatprep.subr.bf16.mxu0 %v1778
    %2241 = vmatpush1.bf16.msra.mxu0 %v1777
    %2242 = vmatprep.subr.bf16.mxu0 %v1785
    %2243 = vmatpush1.bf16.msra.mxu0 %v1784
    %2244 = vmatprep.subr.bf16.mxu0 %v1792
    %2245 = vmatpush1.bf16.msra.mxu0 %v1791
    %2246 = vmatprep.mubr.bf16.mxu0 %v721
    %2247 = vmatmul.mubr.bf16.gmra.mrb[0].mxu0 %v720
    %v2248 = vpop.f32.mrb[0].mxu0
    %v2249 = vadd.f32 0.0, %v2248
    %v2250 = vpop.f32.mrb[0].mxu0
    %v2251 = vadd.f32 0.0, %v2250
    %v2252 = vpop.f32.mrb[0].mxu0
    %v2253 = vpop.f32.mrb[0].mxu0
    %2254 = vdwg.mxu0
    %2255 = vmatprep.subr.bf16.mxu0 %v1799
    %2256 = vmatpush1.bf16.msra.mxu0 %v1798
    %2257 = vmatprep.subr.bf16.mxu0 %v1806
    %2258 = vmatpush1.bf16.msra.mxu0 %v1805
    %2259 = vmatprep.subr.bf16.mxu0 %v1813
    %2260 = vmatpush1.bf16.msra.mxu0 %v1812
    %2261 = vmatprep.subr.bf16.mxu0 %v1820
    %2262 = vmatpush1.bf16.msra.mxu0 %v1819
    %2263 = vmatprep.subr.bf16.mxu0 %v1827
    %2264 = vmatpush1.bf16.msra.mxu0 %v1826
    %2265 = vmatprep.subr.bf16.mxu0 %v1834
    %2266 = vmatpush1.bf16.msra.mxu0 %v1833
    %2267 = vmatprep.subr.bf16.mxu0 %v1841
    %2268 = vmatpush1.bf16.msra.mxu0 %v1840
    %2269 = vmatprep.subr.bf16.mxu0 %v1848
    %2270 = vmatpush1.bf16.msra.mxu0 %v1847
    %2271 = vmatprep.subr.bf16.mxu0 %v1855
    %2272 = vmatpush1.bf16.msra.mxu0 %v1854
    %2273 = vmatprep.subr.bf16.mxu0 %v1862
    %2274 = vmatpush1.bf16.msra.mxu0 %v1861
    %2275 = vmatprep.subr.bf16.mxu0 %v1869
    %2276 = vmatpush1.bf16.msra.mxu0 %v1868
    %2277 = vmatprep.subr.bf16.mxu0 %v1876
    %2278 = vmatpush1.bf16.msra.mxu0 %v1875
    %2279 = vmatprep.subr.bf16.mxu0 %v1883
    %2280 = vmatpush1.bf16.msra.mxu0 %v1882
    %2281 = vmatprep.subr.bf16.mxu0 %v1890
    %2282 = vmatpush1.bf16.msra.mxu0 %v1889
    %2283 = vmatprep.subr.bf16.mxu0 %v1897
    %2284 = vmatpush1.bf16.msra.mxu0 %v1896
    %2285 = vmatprep.subr.bf16.mxu0 %v1904
    %2286 = vmatpush1.bf16.msra.mxu0 %v1903
    %2287 = vmatprep.mubr.bf16.mxu0 %v723
    %2288 = vmatmul.mubr.bf16.gmra.mrb[0].mxu0 %v722
    %v2289 = vpop.f32.mrb[0].mxu0
    %v2290 = vadd.f32 %v2249, %v2289
    %v2291 = vpop.f32.mrb[0].mxu0
    %v2292 = vadd.f32 %v2251, %v2291
    %v2293 = vpop.f32.mrb[0].mxu0
    %v2294 = vpop.f32.mrb[0].mxu0
    %2295 = vdwg.mxu0
    %2296 = vmatprep.subr.bf16.mxu0 %v1689
    %2297 = vmatpush1.bf16.msra.mxu0 %v1688
    %2298 = vmatprep.subr.bf16.mxu0 %v1696
    %2299 = vmatpush1.bf16.msra.mxu0 %v1695
    %2300 = vmatprep.subr.bf16.mxu0 %v1703
    %2301 = vmatpush1.bf16.msra.mxu0 %v1702
    %2302 = vmatprep.subr.bf16.mxu0 %v1710
    %2303 = vmatpush1.bf16.msra.mxu0 %v1709
    %2304 = vmatprep.subr.bf16.mxu0 %v1717
    %2305 = vmatpush1.bf16.msra.mxu0 %v1716
    %2306 = vmatprep.subr.bf16.mxu0 %v1724
    %2307 = vmatpush1.bf16.msra.mxu0 %v1723
    %2308 = vmatprep.subr.bf16.mxu0 %v1731
    %2309 = vmatpush1.bf16.msra.mxu0 %v1730
    %2310 = vmatprep.subr.bf16.mxu0 %v1738
    %2311 = vmatpush1.bf16.msra.mxu0 %v1737
    %2312 = vmatprep.subr.bf16.mxu0 %v1745
    %2313 = vmatpush1.bf16.msra.mxu0 %v1744
    %2314 = vmatprep.subr.bf16.mxu0 %v1752
    %2315 = vmatpush1.bf16.msra.mxu0 %v1751
    %2316 = vmatprep.subr.bf16.mxu0 %v1759
    %2317 = vmatpush1.bf16.msra.mxu0 %v1758
    %2318 = vmatprep.subr.bf16.mxu0 %v1766
    %2319 = vmatpush1.bf16.msra.mxu0 %v1765
    %2320 = vmatprep.subr.bf16.mxu0 %v1773
    %2321 = vmatpush1.bf16.msra.mxu0 %v1772
    %2322 = vmatprep.subr.bf16.mxu0 %v1780
    %2323 = vmatpush1.bf16.msra.mxu0 %v1779
    %2324 = vmatprep.subr.bf16.mxu0 %v1787
    %2325 = vmatpush1.bf16.msra.mxu0 %v1786
    %2326 = vmatprep.subr.bf16.mxu0 %v1794
    %2327 = vmatpush1.bf16.msra.mxu0 %v1793
    %2328 = vmatprep.mubr.bf16.mxu0 %v721
    %2329 = vmatmul.mubr.bf16.gmra.mrb[0].mxu0 %v720
    %v2330 = vpop.f32.mrb[0].mxu0
    %v2331 = vadd.f32 0.0, %v2330
    %v2332 = vpop.f32.mrb[0].mxu0
    %v2333 = vadd.f32 0.0, %v2332
    %v2334 = vpop.f32.mrb[0].mxu0
    %v2335 = vpop.f32.mrb[0].mxu0
    %2336 = vdwg.mxu0
    %2337 = vmatprep.subr.bf16.mxu0 %v1801
    %2338 = vmatpush1.bf16.msra.mxu0 %v1800
    %2339 = vmatprep.subr.bf16.mxu0 %v1808
    %2340 = vmatpush1.bf16.msra.mxu0 %v1807
    %2341 = vmatprep.subr.bf16.mxu0 %v1815
    %2342 = vmatpush1.bf16.msra.mxu0 %v1814
    %2343 = vmatprep.subr.bf16.mxu0 %v1822
    %2344 = vmatpush1.bf16.msra.mxu0 %v1821
    %2345 = vmatprep.subr.bf16.mxu0 %v1829
    %2346 = vmatpush1.bf16.msra.mxu0 %v1828
    %2347 = vmatprep.subr.bf16.mxu0 %v1836
    %2348 = vmatpush1.bf16.msra.mxu0 %v1835
    %2349 = vmatprep.subr.bf16.mxu0 %v1843
    %2350 = vmatpush1.bf16.msra.mxu0 %v1842
    %2351 = vmatprep.subr.bf16.mxu0 %v1850
    %2352 = vmatpush1.bf16.msra.mxu0 %v1849
    %2353 = vmatprep.subr.bf16.mxu0 %v1857
    %2354 = vmatpush1.bf16.msra.mxu0 %v1856
    %2355 = vmatprep.subr.bf16.mxu0 %v1864
    %2356 = vmatpush1.bf16.msra.mxu0 %v1863
    %2357 = vmatprep.subr.bf16.mxu0 %v1871
    %2358 = vmatpush1.bf16.msra.mxu0 %v1870
    %2359 = vmatprep.subr.bf16.mxu0 %v1878
    %2360 = vmatpush1.bf16.msra.mxu0 %v1877
    %2361 = vmatprep.subr.bf16.mxu0 %v1885
    %2362 = vmatpush1.bf16.msra.mxu0 %v1884
    %2363 = vmatprep.subr.bf16.mxu0 %v1892
    %2364 = vmatpush1.bf16.msra.mxu0 %v1891
    %2365 = vmatprep.subr.bf16.mxu0 %v1899
    %2366 = vmatpush1.bf16.msra.mxu0 %v1898
    %2367 = vmatprep.subr.bf16.mxu0 %v1906
    %2368 = vmatpush1.bf16.msra.mxu0 %v1905
    %2369 = vmatprep.mubr.bf16.mxu0 %v723
    %2370 = vmatmul.mubr.bf16.gmra.mrb[0].mxu0 %v722
    %v2371 = vpop.f32.mrb[0].mxu0
    %v2372 = vadd.f32 %v2331, %v2371
    %v2373 = vpop.f32.mrb[0].mxu0
    %v2374 = vadd.f32 %v2333, %v2373
    %v2375 = vpop.f32.mrb[0].mxu0
    %v2376 = vpop.f32.mrb[0].mxu0
    %2377 = vdwg.mxu0
    %2378 = vmatprep.subr.bf16.mxu0 0
    %2379 = vmatpush1.bf16.msra.mxu0 %v1690
    %2380 = vmatprep.subr.bf16.mxu0 0
    %2381 = vmatpush1.bf16.msra.mxu0 %v1697
    %2382 = vmatprep.subr.bf16.mxu0 0
    %2383 = vmatpush1.bf16.msra.mxu0 %v1704
    %2384 = vmatprep.subr.bf16.mxu0 0
    %2385 = vmatpush1.bf16.msra.mxu0 %v1711
    %2386 = vmatprep.subr.bf16.mxu0 0
    %2387 = vmatpush1.bf16.msra.mxu0 %v1718
    %2388 = vmatprep.subr.bf16.mxu0 0
    %2389 = vmatpush1.bf16.msra.mxu0 %v1725
    %2390 = vmatprep.subr.bf16.mxu0 0
    %2391 = vmatpush1.bf16.msra.mxu0 %v1732
    %2392 = vmatprep.subr.bf16.mxu0 0
    %2393 = vmatpush1.bf16.msra.mxu0 %v1739
    %2394 = vmatprep.subr.bf16.mxu0 0
    %2395 = vmatpush1.bf16.msra.mxu0 %v1746
    %2396 = vmatprep.subr.bf16.mxu0 0
    %2397 = vmatpush1.bf16.msra.mxu0 %v1753
    %2398 = vmatprep.subr.bf16.mxu0 0
    %2399 = vmatpush1.bf16.msra.mxu0 %v1760
    %2400 = vmatprep.subr.bf16.mxu0 0
    %2401 = vmatpush1.bf16.msra.mxu0 %v1767
    %2402 = vmatprep.subr.bf16.mxu0 0
    %2403 = vmatpush1.bf16.msra.mxu0 %v1774
    %2404 = vmatprep.subr.bf16.mxu0 0
    %2405 = vmatpush1.bf16.msra.mxu0 %v1781
    %2406 = vmatprep.subr.bf16.mxu0 0
    %2407 = vmatpush1.bf16.msra.mxu0 %v1788
    %2408 = vmatprep.subr.bf16.mxu0 0
    %2409 = vmatpush1.bf16.msra.mxu0 %v1795
    %2410 = vmatprep.mubr.bf16.mxu0 %v721
    %2411 = vmatmul.mubr.bf16.gmra.mrb[0].mxu0 %v720
    %v2412 = vpop.f32.mrb[0].mxu0
    %v2413 = vadd.f32 0.0, %v2412
    %v2414 = vpop.f32.mrb[0].mxu0
    %v2415 = vpop.f32.mrb[0].mxu0
    %v2416 = vpop.f32.mrb[0].mxu0
    %2417 = vdwg.mxu0
    %2418 = vmatprep.subr.bf16.mxu0 0
    %2419 = vmatpush1.bf16.msra.mxu0 %v1802
    %2420 = vmatprep.subr.bf16.mxu0 0
    %2421 = vmatpush1.bf16.msra.mxu0 %v1809
    %2422 = vmatprep.subr.bf16.mxu0 0
    %2423 = vmatpush1.bf16.msra.mxu0 %v1816
    %2424 = vmatprep.subr.bf16.mxu0 0
    %2425 = vmatpush1.bf16.msra.mxu0 %v1823
    %2426 = vmatprep.subr.bf16.mxu0 0
    %2427 = vmatpush1.bf16.msra.mxu0 %v1830
    %2428 = vmatprep.subr.bf16.mxu0 0
    %2429 = vmatpush1.bf16.msra.mxu0 %v1837
    %2430 = vmatprep.subr.bf16.mxu0 0
    %2431 = vmatpush1.bf16.msra.mxu0 %v1844
    %2432 = vmatprep.subr.bf16.mxu0 0
    %2433 = vmatpush1.bf16.msra.mxu0 %v1851
    %2434 = vmatprep.subr.bf16.mxu0 0
    %2435 = vmatpush1.bf16.msra.mxu0 %v1858
    %2436 = vmatprep.subr.bf16.mxu0 0
    %2437 = vmatpush1.bf16.msra.mxu0 %v1865
    %2438 = vmatprep.subr.bf16.mxu0 0
    %2439 = vmatpush1.bf16.msra.mxu0 %v1872
    %2440 = vmatprep.subr.bf16.mxu0 0
    %2441 = vmatpush1.bf16.msra.mxu0 %v1879
    %2442 = vmatprep.subr.bf16.mxu0 0
    %2443 = vmatpush1.bf16.msra.mxu0 %v1886
    %2444 = vmatprep.subr.bf16.mxu0 0
    %2445 = vmatpush1.bf16.msra.mxu0 %v1893
    %2446 = vmatprep.subr.bf16.mxu0 0
    %2447 = vmatpush1.bf16.msra.mxu0 %v1900
    %2448 = vmatprep.subr.bf16.mxu0 0
    %2449 = vmatpush1.bf16.msra.mxu0 %v1907
    %2450 = vmatprep.mubr.bf16.mxu0 %v723
    %2451 = vmatmul.mubr.bf16.gmra.mrb[0].mxu0 %v722
    %v2452 = vpop.f32.mrb[0].mxu0
    %v2453 = vadd.f32 %v2413, %v2452
    %v2454 = vpop.f32.mrb[0].mxu0
    %v2455 = vpop.f32.mrb[0].mxu0
    %v2456 = vpop.f32.mrb[0].mxu0
    %2457 = vdwg.mxu0
    %2458 = vst [vmem:[#allocation2] sm:$0xff] %v2208
    %2459 = vst [vmem:[#allocation2 + $0x8] sm:$0xff] %v2210
    %2460 = vst [vmem:[#allocation2 + $0x10] sm:$0xff] %v2290
    %2461 = vst [vmem:[#allocation2 + $0x18] sm:$0xff] %v2292
    %2462 = vst [vmem:[#allocation2 + $0x20] sm:$0xff] %v2372
    %2463 = vst [vmem:[#allocation2 + $0x28] sm:$0xff] %v2374
    %vm2464 = vcmask 130048
    %2465 = vst.msk [vmem:[#allocation2 + $0x30] sm:$0xff] %vm2464, %v2453
    // Predicated region
    $region18: #{tpu_custom_call.1} parent=1 // pred_check
      _
    $region19: #{tpu_custom_call.1} parent=1 // pred_check_branch
      %2467 = sbr.rel (0) target = $region21
    $region20: #{tpu_custom_call.1} parent=1 // pred_region
      %s2469 = ssub.s32 896, 896
      %2470 = vsyncadd [#allocation3], %s2469
      %s2472 = sshll.u32 [#allocation2], 4
      %s2473 = int_to_ptr.vmem [resolvable:$true] %s2472
      %2475 = dma.vmem_to_hbm [thread:$0]  %s2473, 896, %s4, [#allocation3]
    $region21: #{tpu_custom_call.1} parent=1 // pred_fallthru
      _
    // Predicated region
    $region22: #{tpu_custom_call.1} parent=1 // pred_check
      _
    $region23: #{tpu_custom_call.1} parent=1 // pred_check_branch
      %2477 = sbr.rel (0) target = $region25
    $region24: #{tpu_custom_call.1} parent=1 // pred_region
      %2478 = dma.done [#allocation3], 896
    $region25: #{tpu_custom_call.1} parent=1 // pred_fallthru
      _
    %2479 = vsyncpa [#allocation3], 1

</llo_original>
